<compile_context>
chip_gen: v5e
topology: v5e:2x2
jax: 0.10.0
libtpu: 0.0.40
codegen_flags: <defaults>
</compile_context>

<pallas_src>
import functools
import math

import jax
import jax.numpy as jnp
from jax import lax
from jax.experimental import pallas as pl
from jax.experimental.pallas import tpu as pltpu


def _round_up(x, m):
    return ((x + m - 1) // m) * m


def _pick_q_tile(lq, min_tiles=1):
    """Largest (8,128)-legal query tile giving at least `min_tiles` tiles."""
    cap = min(lq, 128)
    for t in range(cap, 7, -1):
        if lq % t == 0 and t % 8 == 0 and lq // t >= min_tiles:
            return t
    if lq <= 128:
        return lq                     # block == full array dim is always legal
    for t in range(cap, 7, -1):
        if lq % t == 0 and t % 8 == 0:
            return t
    return lq                         # TODO(synk): pad awkward Lq values


# ---------------------------------------------------------------------------
# Pallas kernel: grid = (batch, q_tile).  All heads handled per grid step.
# ---------------------------------------------------------------------------
def _cv_mha_kernel(q_ref, k_ref, v_ref,
                   wq_ref, wk_ref, wv_ref, fc_ref, lnw_ref, lnb_ref,
                   outr_ref, outi_ref,
                   kproj_ref, vproj_ref,
                   *, n_heads, d_k, d_v, d_model, eps, compute_dtype):
    cd = compute_dtype
    f32 = jnp.float32
    dp = outr_ref.shape[-1]

    # --- K/V projections depend only on the batch index: compute once per
    #     batch.  q-tile axis is the inner sequential ("arbitrary") grid axis,
    #     so t==0 always runs first for each batch a core owns. ---------------
    @pl.when(pl.program_id(1) == 0)
    def _():
        k_st = k_ref[0].astype(cd)                       # (Lk, 2*Dp) = [Kr|Ki]
        v_st = v_ref[0].astype(cd)
        kproj_ref[...] = jnp.dot(k_st, wk_ref[...].astype(cd),
                                 preferred_element_type=f32
                                 ).astype(kproj_ref.dtype)
        vproj_ref[...] = jnp.dot(v_st, wv_ref[...].astype(cd),
                                 preferred_element_type=f32
                                 ).astype(vproj_ref.dtype)

    # --- Q projection (all heads, one real-embedded complex matmul) ----------
    q_st = q_ref[0]                                      # (TQ, 2*Dp) = [Qr|Qi]
    qproj = jnp.dot(q_st.astype(cd), wq_ref[...].astype(cd),
                    preferred_element_type=f32)          # (TQ, H*2*d_k)

    kproj = kproj_ref[...]                               # (Lk, H*2*d_k)
    vproj = vproj_ref[...]                               # (Lv, H*2*d_v)

    dn_nt = (((1,), (1,)), ((), ()))                     # contraction: A @ B^T

    o_parts = []
    for h in range(n_heads):                             # static unroll
        # per-head slices; weight columns are interleaved [real d_k | imag d_k]
        qh = qproj[:, h * 2 * d_k:(h + 1) * 2 * d_k]     # (TQ, 2dk) = [qhr|qhi]
        kh = kproj[:, h * 2 * d_k:(h + 1) * 2 * d_k]     # (Lk, 2dk) = [khr|khi]
        khr, khi = kh[:, :d_k], kh[:, d_k:]
        vh = vproj[:, h * 2 * d_v:(h + 1) * 2 * d_v]     # (Lv, 2dv)
        vhr, vhi = vh[:, :d_v].astype(cd), vh[:, d_v:].astype(cd)

        # complex scores S = Q K^T : stacked 2-matmul form, depth 2*d_k
        k_for_r = jnp.concatenate([khr, -khi], axis=-1).astype(cd)
        k_for_i = jnp.concatenate([khi, khr], axis=-1).astype(cd)
        qh = qh.astype(cd)
        sr = lax.dot_general(qh, k_for_r, dn_nt, preferred_element_type=f32)
        si = lax.dot_general(qh, k_for_i, dn_nt, preferred_element_type=f32)

        # CVSoftMax: softmax(|S|) preserving phase.  One rsqrt yields both |S|
        # and 1/|S|; |S|==0 guarded so zero scores give zero weight (not NaN).
        sq = sr * sr + si * si
        inv_mag = lax.rsqrt(jnp.maximum(sq, 1e-30))
        mag = sq * inv_mag                               # == |S|
        m = jnp.max(mag, axis=-1, keepdims=True)
        e = jnp.exp(mag - m)
        p = e * pl.reciprocal(jnp.sum(e, axis=-1, keepdims=True), approx=True)
        scale = p * inv_mag                              # softmax(|S|) / |S|
        ar = (sr * scale).astype(cd)
        ai = (si * scale).astype(cd)

        # A @ V (complex): 4 plain matmuls (no cancellation, no big temps)
        ohr = (jnp.dot(ar, vhr, preferred_element_type=f32)
               - jnp.dot(ai, vhi, preferred_element_type=f32))
        ohi = (jnp.dot(ar, vhi, preferred_element_type=f32)
               + jnp.dot(ai, vhr, preferred_element_type=f32))
        o_parts.append(ohr)
        o_parts.append(ohi)

    # --- output projection for all heads in one real-embedded matmul ---------
    o_st = jnp.concatenate(o_parts, axis=-1).astype(cd)  # (TQ, H*2*d_v)
    out_st = jnp.dot(o_st, fc_ref[...].astype(cd),
                     preferred_element_type=f32)         # (TQ, 2*Dp) = [Or|Oi]

    # --- residual (dropout = identity) + complex whitening LayerNorm ---------
    xr = out_st[:, :dp] + q_st[:, :dp]
    xi = out_st[:, dp:] + q_st[:, dp:]
    mask = (lax.broadcasted_iota(jnp.int32, (1, dp), 1) < d_model).astype(f32)
    inv_d = 1.0 / d_model
    mr = jnp.sum(xr * mask, axis=-1, keepdims=True) * inv_d
    mi = jnp.sum(xi * mask, axis=-1, keepdims=True) * inv_d
    er = (xr - mr) * mask
    ei = (xi - mi) * mask
    vrr = jnp.sum(er * er, axis=-1, keepdims=True) * inv_d + eps
    vii = jnp.sum(ei * ei, axis=-1, keepdims=True) * inv_d + eps
    vri = jnp.sum(er * ei, axis=-1, keepdims=True) * inv_d
    det = jnp.maximum(vrr * vii - vri * vri, 0.0)        # clamp f32 round-off
    s = jnp.sqrt(det)
    t = jnp.sqrt(vrr + vii + 2.0 * s)
    inv_st = pl.reciprocal(s * t, approx=False)
    rrr = (vii + s) * inv_st
    rii = (vrr + s) * inv_st
    rri = -vri * inv_st
    nr = rrr * er + rri * ei
    ni = rri * er + rii * ei

    w = lnw_ref[...]                                     # (4, Dp)
    b = lnb_ref[...]                                     # (2, Dp)
    outr_ref[0] = w[0:1, :] * nr + w[1:2, :] * ni + b[0:1, :]
    outi_ref[0] = w[2:3, :] * nr + w[3:4, :] * ni + b[1:2, :]


# ---------------------------------------------------------------------------
# one-time host-side weight re-layout (hoisted out of the per-call path)
# ---------------------------------------------------------------------------
def prepare_cv_mha_params(params, *, n_heads, d_k, d_v, d_model):
    wqr, wqi, wkr, wki, wvr, wvi, fcr, fci, lnw, lnb = params
    f32 = jnp.float32
    dp = _round_up(d_model, 128)
    inv_temp = 1.0 / (d_k ** 0.5)                        # fold 1/sqrt(d_k) in W_q

    def stack_in(wr, wi, d_head):
        # (d_model, H*d_head) -> (2*Dp, H*2*d_head); per-head cols [real|imag]
        wr = jnp.pad(wr.astype(f32), ((0, dp - d_model), (0, 0)))
        wi = jnp.pad(wi.astype(f32), ((0, dp - d_model), (0, 0)))
        wr = wr.reshape(dp, n_heads, d_head)
        wi = wi.reshape(dp, n_heads, d_head)
        top = jnp.concatenate([wr, wi], axis=-1)         # rows hit by x_r
        bot = jnp.concatenate([-wi, wr], axis=-1)        # rows hit by x_i
        blk = jnp.concatenate([top, bot], axis=0)        # (2*Dp, H, 2*d_head)
        return blk.reshape(2 * dp, n_heads * 2 * d_head)

    def stack_out(wr, wi):
        # (H*d_v, d_model) -> (H*2*d_v, 2*Dp); per-head rows [real dv | imag dv]
        wr = jnp.pad(wr.astype(f32), ((0, 0), (0, dp - d_model)))
        wi = jnp.pad(wi.astype(f32), ((0, 0), (0, dp - d_model)))
        wr = wr.reshape(n_heads, d_v, dp)
        wi = wi.reshape(n_heads, d_v, dp)
        top = jnp.concatenate([wr, wi], axis=-1)         # rows hit by o_r
        bot = jnp.concatenate([-wi, wr], axis=-1)        # rows hit by o_i
        blk = jnp.concatenate([top, bot], axis=1)        # (H, 2*d_v, 2*Dp)
        return blk.reshape(n_heads * 2 * d_v, 2 * dp)

    wq_st = stack_in(wqr * inv_temp, wqi * inv_temp, d_k)
    wk_st = stack_in(wkr, wki, d_k)
    wv_st = stack_in(wvr, wvi, d_v)
    fc_st = stack_out(fcr, fci)
    lnw_p = jnp.pad(lnw.astype(f32), ((0, 0), (0, dp - d_model)))
    lnb_p = jnp.pad(lnb.astype(f32), ((0, 0), (0, dp - d_model)))
    return wq_st, wk_st, wv_st, fc_st, lnw_p, lnb_p


# ---------------------------------------------------------------------------
# wrapper: input padding/stacking, BlockSpecs, grid
# ---------------------------------------------------------------------------
def cv_multihead_attention(qr, qi, kr, ki, vr, vi, prepared,
                           *, n_heads, d_k, d_v, eps=1e-6,
                           compute_dtype=jnp.bfloat16):
    B, Lq, d_model = qr.shape
    Lk, Lv = kr.shape[1], vr.shape[1]
    assert Lk == Lv, "key/value sequence lengths must match"
    wq_st, wk_st, wv_st, fc_st, lnw_p, lnb_p = prepared
    dp = lnw_p.shape[-1]
    f32 = jnp.float32

    # weights go through the MXU only: store/DMA them in compute_dtype
    wq_st = wq_st.astype(compute_dtype)
    wk_st = wk_st.astype(compute_dtype)
    wv_st = wv_st.astype(compute_dtype)
    fc_st = fc_st.astype(compute_dtype)

    tq = _pick_q_tile(Lq, min_tiles=2 if B < 2 else 1)   # keep both v7x TCs busy
    nq = Lq // tq

    def pad_stack(xr, xi):
        pad = dp - d_model
        xr = jnp.pad(xr.astype(f32), ((0, 0), (0, 0), (0, pad)))
        xi = jnp.pad(xi.astype(f32), ((0, 0), (0, 0), (0, pad)))
        return jnp.concatenate([xr, xi], axis=-1)        # (B, L, 2*Dp)

    q_st = pad_stack(qr, qi)
    k_st = pad_stack(kr, ki)
    v_st = pad_stack(vr, vi)

    hdk2 = 2 * n_heads * d_k
    hdv2 = 2 * n_heads * d_v

    kernel = functools.partial(_cv_mha_kernel, n_heads=n_heads, d_k=d_k,
                               d_v=d_v, d_model=d_model, eps=eps,
                               compute_dtype=compute_dtype)

    in_specs = [
        pl.BlockSpec((1, tq, 2 * dp), lambda b, t: (b, t, 0)),   # q stacked
        pl.BlockSpec((1, Lk, 2 * dp), lambda b, t: (b, 0, 0)),   # k stacked
        pl.BlockSpec((1, Lv, 2 * dp), lambda b, t: (b, 0, 0)),   # v stacked
        pl.BlockSpec((2 * dp, hdk2), lambda b, t: (0, 0)),       # W_q stacked
        pl.BlockSpec((2 * dp, hdk2), lambda b, t: (0, 0)),       # W_k stacked
        pl.BlockSpec((2 * dp, hdv2), lambda b, t: (0, 0)),       # W_v stacked
        pl.BlockSpec((hdv2, 2 * dp), lambda b, t: (0, 0)),       # fc stacked
        pl.BlockSpec((4, dp), lambda b, t: (0, 0)),              # LN weight
        pl.BlockSpec((2, dp), lambda b, t: (0, 0)),              # LN bias
    ]
    out_specs = [pl.BlockSpec((1, tq, dp), lambda b, t: (b, t, 0)),
                 pl.BlockSpec((1, tq, dp), lambda b, t: (b, t, 0))]
    out_shape = (jax.ShapeDtypeStruct((B, Lq, dp), f32),
                 jax.ShapeDtypeStruct((B, Lq, dp), f32))
    scratch_shapes = [pltpu.VMEM((Lk, hdk2), compute_dtype),     # K proj cache
                      pltpu.VMEM((Lv, hdv2), compute_dtype)]     # V proj cache

    outr_p, outi_p = pl.pallas_call(
        kernel,
        out_shape=out_shape,
        grid_spec=pltpu.PrefetchScalarGridSpec(
            num_scalar_prefetch=0,
            grid=(B, nq),
            in_specs=in_specs,
            out_specs=out_specs,
            scratch_shapes=scratch_shapes),
        compiler_params=pltpu.CompilerParams(
            dimension_semantics=("parallel", "arbitrary"),
            vmem_limit_bytes=48 * 1024 * 1024),
    )(q_st, k_st, v_st, wq_st, wk_st, wv_st, fc_st, lnw_p, lnb_p)

    return outr_p[:, :, :d_model], outi_p[:, :, :d_model]


# ---------------------------------------------------------------------------
# pure-JAX reference (complex64) for correctness check
# ---------------------------------------------------------------------------
def reference(qc, kc, vc, params, n_heads, d_k, d_v, eps=1e-6):
    wqr, wqi, wkr, wki, wvr, wvi, fcr, fci, lnw, lnb = params
    wq, wk, wv, fc = wqr + 1j * wqi, wkr + 1j * wki, wvr + 1j * wvi, fcr + 1j * fci
    B, Lq, D = qc.shape
    res = qc
    q = (qc @ wq).reshape(B, Lq, n_heads, d_k).transpose(0, 2, 1, 3)
    k = (kc @ wk).reshape(B, -1, n_heads, d_k).transpose(0, 2, 1, 3)
    v = (vc @ wv).reshape(B, -1, n_heads, d_v).transpose(0, 2, 1, 3)
    s = jnp.einsum('bhqd,bhkd->bhqk', q / (d_k ** 0.5), k)
    mag = jnp.abs(s)
    p = jax.nn.softmax(mag, axis=-1)
    attn = p * s / mag
    o = jnp.einsum('bhqk,bhkd->bhqd', attn, v)
    o = o.transpose(0, 2, 1, 3).reshape(B, Lq, n_heads * d_v)
    x = o @ fc + res
    xr, xi = x.real, x.imag
    mr = xr.mean(-1, keepdims=True)
    mi = xi.mean(-1, keepdims=True)
    er, ei = xr - mr, xi - mi
    vrr = (er * er).mean(-1, keepdims=True) + eps
    vii = (ei * ei).mean(-1, keepdims=True) + eps
    vri = (er * ei).mean(-1, keepdims=True)
    sdet = jnp.sqrt(vrr * vii - vri * vri)
    t = jnp.sqrt(vrr + vii + 2.0 * sdet)
    inv_st = 1.0 / (sdet * t)
    rrr, rii, rri = (vii + sdet) * inv_st, (vrr + sdet) * inv_st, -vri * inv_st
    nr = rrr * er + rri * ei
    ni = rri * er + rii * ei
    outr = lnw[0] * nr + lnw[1] * ni + lnb[0]
    outi = lnw[2] * nr + lnw[3] * ni + lnb[1]
    return outr, outi


# ---------------------------------------------------------------------------
if __name__ == "__main__":
    B, L, d_model = 2, 8, 32
    n_heads, d_k, d_v = 4, 8, 8

    key = jax.random.PRNGKey(0)
    ks = jax.random.split(key, 16)

    f32 = jnp.float32
    qr = jax.random.normal(ks[0], (B, L, d_model), f32)
    qi = jax.random.normal(ks[1], (B, L, d_model), f32)
    kr = jax.random.normal(ks[2], (B, L, d_model), f32)
    ki = jax.random.normal(ks[3], (B, L, d_model), f32)
    vr = jax.random.normal(ks[4], (B, L, d_model), f32)
    vi = jax.random.normal(ks[5], (B, L, d_model), f32)

    wsc = 1.0 / math.sqrt(d_model)
    wqr = jax.random.normal(ks[6], (d_model, n_heads * d_k), f32) * wsc
    wqi = jax.random.normal(ks[7], (d_model, n_heads * d_k), f32) * wsc
    wkr = jax.random.normal(ks[8], (d_model, n_heads * d_k), f32) * wsc
    wki = jax.random.normal(ks[9], (d_model, n_heads * d_k), f32) * wsc
    wvr = jax.random.normal(ks[10], (d_model, n_heads * d_v), f32) * wsc
    wvi = jax.random.normal(ks[11], (d_model, n_heads * d_v), f32) * wsc
    fsc = 1.0 / math.sqrt(n_heads * d_v)
    fcr = jax.random.normal(ks[12], (n_heads * d_v, d_model), f32) * fsc
    fci = jax.random.normal(ks[13], (n_heads * d_v, d_model), f32) * fsc

    # complex-LayerNorm affine: Wrr = Wii = 1/sqrt(2), Wri = Wir = 0, bias = 0
    inv_sqrt2 = 1.0 / math.sqrt(2.0)
    lnw = jnp.stack([jnp.full((d_model,), inv_sqrt2, f32),
                     jnp.zeros((d_model,), f32),
                     jnp.zeros((d_model,), f32),
                     jnp.full((d_model,), inv_sqrt2, f32)])
    lnb = jnp.zeros((2, d_model), f32)

    params = (wqr, wqi, wkr, wki, wvr, wvi, fcr, fci, lnw, lnb)

    # one-time weight re-layout (hoisted out of the forward path)
    prepared = prepare_cv_mha_params(params, n_heads=n_heads, d_k=d_k,
                                     d_v=d_v, d_model=d_model)

    run_f32 = jax.jit(functools.partial(
        cv_multihead_attention, n_heads=n_heads, d_k=d_k, d_v=d_v,
        compute_dtype=jnp.float32))
    run_bf16 = jax.jit(functools.partial(
        cv_multihead_attention, n_heads=n_heads, d_k=d_k, d_v=d_v,
        compute_dtype=jnp.bfloat16))

    ref_r, ref_i = reference(qr + 1j * qi, kr + 1j * ki, vr + 1j * vi, params,
                             n_heads, d_k, d_v)

    # f32 compute: exact parity with the reference module
    outr, outi = run_f32(qr, qi, kr, ki, vr, vi, prepared)
    jax.block_until_ready((outr, outi))
    assert jnp.allclose(outr, ref_r, atol=1e-2, rtol=1e-2), "f32 real mismatch"
    assert jnp.allclose(outi, ref_i, atol=1e-2, rtol=1e-2), "f32 imag mismatch"

    # bf16 MXU operands (default fast path): looser numeric check
    outr_b, outi_b = run_bf16(qr, qi, kr, ki, vr, vi, prepared)
    jax.block_until_ready((outr_b, outi_b))
    assert jnp.allclose(outr_b, ref_r, atol=1e-1, rtol=1e-1), "bf16 real mismatch"
    assert jnp.allclose(outi_b, ref_i, atol=1e-1, rtol=1e-1), "bf16 imag mismatch"

    print("KERNEL_OK")
</pallas_src>

<mosaic_0001>
module attributes {stable_mosaic.version = 11 : i64} {
  func.func @_cv_mha_kernel(%arg0: i32, %arg1: i32, %arg2: memref<1x8x256xf32, #tpu.memory_space<vmem>>, %arg3: memref<1x8x256xf32, #tpu.memory_space<vmem>>, %arg4: memref<1x8x256xf32, #tpu.memory_space<vmem>>, %arg5: memref<256x64xf32, #tpu.memory_space<vmem>>, %arg6: memref<256x64xf32, #tpu.memory_space<vmem>>, %arg7: memref<256x64xf32, #tpu.memory_space<vmem>>, %arg8: memref<64x256xf32, #tpu.memory_space<vmem>>, %arg9: memref<4x128xf32, #tpu.memory_space<vmem>>, %arg10: memref<2x128xf32, #tpu.memory_space<vmem>>, %arg11: memref<1x8x128xf32, #tpu.memory_space<vmem>>, %arg12: memref<1x8x128xf32, #tpu.memory_space<vmem>>, %arg13: memref<8x64xf32, #tpu.memory_space<vmem>>, %arg14: memref<8x64xf32, #tpu.memory_space<vmem>>) attributes {dimension_semantics = [#tpu.dimension_semantics<parallel>, #tpu.dimension_semantics<arbitrary>], iteration_bounds = array<i64: 2, 1>, scalar_prefetch = 0 : i64, scratch_operands = 2 : i64, tpu.core_type = #tpu.core_type<tc>, window_params = [{transform_indices = @transform_0, window_bounds = array<i64: 1, 8, 256>}, {transform_indices = @transform_1, window_bounds = array<i64: 1, 8, 256>}, {transform_indices = @transform_2, window_bounds = array<i64: 1, 8, 256>}, {pipeline_mode = #tpu.pipeline_mode<synchronous>, transform_indices = @transform_3, window_bounds = array<i64: 256, 64>}, {pipeline_mode = #tpu.pipeline_mode<synchronous>, transform_indices = @transform_4, window_bounds = array<i64: 256, 64>}, {pipeline_mode = #tpu.pipeline_mode<synchronous>, transform_indices = @transform_5, window_bounds = array<i64: 256, 64>}, {pipeline_mode = #tpu.pipeline_mode<synchronous>, transform_indices = @transform_6, window_bounds = array<i64: 64, 256>}, {pipeline_mode = #tpu.pipeline_mode<synchronous>, transform_indices = @transform_7, window_bounds = array<i64: 4, 128>}, {pipeline_mode = #tpu.pipeline_mode<synchronous>, transform_indices = @transform_8, window_bounds = array<i64: 2, 128>}, {transform_indices = @transform_9, window_bounds = array<i64: 1, 8, 128>}, {transform_indices = @transform_10, window_bounds = array<i64: 1, 8, 128>}]} {
    %c0_i32 = arith.constant 0 : i32
    %0 = arith.cmpi eq, %arg1, %c0_i32 : i32
    %1 = arith.extui %0 : i1 to i32
    %c0_i32_0 = arith.constant 0 : i32
    %2 = arith.cmpi ne, %1, %c0_i32_0 : i32
    scf.if %2 {
      %c0_77 = arith.constant 0 : index
      %c0_78 = arith.constant 0 : index
      %c0_79 = arith.constant 0 : index
      %276 = vector.load %arg3[%c0_77, %c0_78, %c0_79] : memref<1x8x256xf32, #tpu.memory_space<vmem>>, vector<1x8x256xf32>
      %277 = vector.shape_cast %276 : vector<1x8x256xf32> to vector<8x256xf32>
      %c0_80 = arith.constant 0 : index
      %c0_81 = arith.constant 0 : index
      %c0_82 = arith.constant 0 : index
      %278 = vector.load %arg4[%c0_80, %c0_81, %c0_82] : memref<1x8x256xf32, #tpu.memory_space<vmem>>, vector<1x8x256xf32>
      %279 = vector.shape_cast %278 : vector<1x8x256xf32> to vector<8x256xf32>
      %c0_83 = arith.constant 0 : index
      %c0_84 = arith.constant 0 : index
      %280 = vector.load %arg6[%c0_83, %c0_84] : memref<256x64xf32, #tpu.memory_space<vmem>>, vector<256x64xf32>
      %cst_85 = arith.constant dense<0.000000e+00> : vector<8x64xf32>
      %281 = tpu.matmul %277, %280, %cst_85 {dimension_numbers = #tpu.dot_dimension_numbers<[1], [0], [0], [1], [0, 0, 1, 1], [], []>} : vector<8x256xf32>, vector<256x64xf32>, vector<8x64xf32> -> vector<8x64xf32>
      %c0_86 = arith.constant 0 : index
      %c0_87 = arith.constant 0 : index
      %282 = vector.load %arg13[%c0_86, %c0_87] : memref<8x64xf32, #tpu.memory_space<vmem>>, vector<8x64xf32>
      tpu.vector_store %arg13[%c0_86, %c0_87], %281 {strides = array<i32>} : memref<8x64xf32, #tpu.memory_space<vmem>>, vector<8x64xf32>,
      %c0_88 = arith.constant 0 : index
      %c0_89 = arith.constant 0 : index
      %283 = vector.load %arg7[%c0_88, %c0_89] : memref<256x64xf32, #tpu.memory_space<vmem>>, vector<256x64xf32>
      %cst_90 = arith.constant dense<0.000000e+00> : vector<8x64xf32>
      %284 = tpu.matmul %279, %283, %cst_90 {dimension_numbers = #tpu.dot_dimension_numbers<[1], [0], [0], [1], [0, 0, 1, 1], [], []>} : vector<8x256xf32>, vector<256x64xf32>, vector<8x64xf32> -> vector<8x64xf32>
      %c0_91 = arith.constant 0 : index
      %c0_92 = arith.constant 0 : index
      %285 = vector.load %arg14[%c0_91, %c0_92] : memref<8x64xf32, #tpu.memory_space<vmem>>, vector<8x64xf32>
      tpu.vector_store %arg14[%c0_91, %c0_92], %284 {strides = array<i32>} : memref<8x64xf32, #tpu.memory_space<vmem>>, vector<8x64xf32>,
    } else {
    }
    %c0 = arith.constant 0 : index
    %c0_1 = arith.constant 0 : index
    %c0_2 = arith.constant 0 : index
    %3 = vector.load %arg2[%c0, %c0_1, %c0_2] : memref<1x8x256xf32, #tpu.memory_space<vmem>>, vector<1x8x256xf32>
    %4 = vector.shape_cast %3 : vector<1x8x256xf32> to vector<8x256xf32>
    %c0_3 = arith.constant 0 : index
    %c0_4 = arith.constant 0 : index
    %5 = vector.load %arg5[%c0_3, %c0_4] : memref<256x64xf32, #tpu.memory_space<vmem>>, vector<256x64xf32>
    %cst = arith.constant dense<0.000000e+00> : vector<8x64xf32>
    %6 = tpu.matmul %4, %5, %cst {dimension_numbers = #tpu.dot_dimension_numbers<[1], [0], [0], [1], [0, 0, 1, 1], [], []>} : vector<8x256xf32>, vector<256x64xf32>, vector<8x64xf32> -> vector<8x64xf32>
    %c0_5 = arith.constant 0 : index
    %c0_6 = arith.constant 0 : index
    %7 = vector.load %arg13[%c0_5, %c0_6] : memref<8x64xf32, #tpu.memory_space<vmem>>, vector<8x64xf32>
    %c0_7 = arith.constant 0 : index
    %c0_8 = arith.constant 0 : index
    %8 = vector.load %arg14[%c0_7, %c0_8] : memref<8x64xf32, #tpu.memory_space<vmem>>, vector<8x64xf32>
    %9 = vector.extract_strided_slice %6 {offsets = [0, 0], sizes = [8, 16], strides = [1, 1]} : vector<8x64xf32> to vector<8x16xf32>
    %10 = vector.extract_strided_slice %7 {offsets = [0, 0], sizes = [8, 16], strides = [1, 1]} : vector<8x64xf32> to vector<8x16xf32>
    %11 = vector.extract_strided_slice %10 {offsets = [0, 0], sizes = [8, 8], strides = [1, 1]} : vector<8x16xf32> to vector<8x8xf32>
    %12 = vector.extract_strided_slice %10 {offsets = [0, 8], sizes = [8, 8], strides = [1, 1]} : vector<8x16xf32> to vector<8x8xf32>
    %13 = vector.extract_strided_slice %8 {offsets = [0, 0], sizes = [8, 16], strides = [1, 1]} : vector<8x64xf32> to vector<8x16xf32>
    %14 = vector.extract_strided_slice %13 {offsets = [0, 0], sizes = [8, 8], strides = [1, 1]} : vector<8x16xf32> to vector<8x8xf32>
    %15 = vector.extract_strided_slice %13 {offsets = [0, 8], sizes = [8, 8], strides = [1, 1]} : vector<8x16xf32> to vector<8x8xf32>
    %cst_9 = arith.constant 0.000000e+00 : f32
    %16 = vector.broadcast %cst_9 : f32 to vector<8x8xf32>
    %17 = arith.subf %16, %12 : vector<8x8xf32>
    %18 = tpu.concatenate %11, %17 in 1 : vector<8x8xf32>, vector<8x8xf32> -> vector<8x16xf32>
    %19 = tpu.concatenate %12, %11 in 1 : vector<8x8xf32>, vector<8x8xf32> -> vector<8x16xf32>
    %cst_10 = arith.constant dense<0.000000e+00> : vector<8x8xf32>
    %20 = tpu.matmul %9, %18, %cst_10 {dimension_numbers = #tpu.dot_dimension_numbers<[1], [1], [0], [0], [0, 0, 1, 0], [], []>} : vector<8x16xf32>, vector<8x16xf32>, vector<8x8xf32> -> vector<8x8xf32>
    %cst_11 = arith.constant dense<0.000000e+00> : vector<8x8xf32>
    %21 = tpu.matmul %9, %19, %cst_11 {dimension_numbers = #tpu.dot_dimension_numbers<[1], [1], [0], [0], [0, 0, 1, 0], [], []>} : vector<8x16xf32>, vector<8x16xf32>, vector<8x8xf32> -> vector<8x8xf32>
    %22 = arith.mulf %20, %20 : vector<8x8xf32>
    %23 = arith.mulf %21, %21 : vector<8x8xf32>
    %24 = arith.addf %22, %23 : vector<8x8xf32>
    %cst_12 = arith.constant 1.000000e-30 : f32
    %25 = vector.broadcast %cst_12 : f32 to vector<8x8xf32>
    %26 = arith.maximumf %24, %25 : vector<8x8xf32>
    %27 = math.rsqrt %26 : vector<8x8xf32>
    %28 = arith.mulf %24, %27 : vector<8x8xf32>
    %cst_13 = arith.constant dense<0xFF800000> : vector<8xf32>
    %29 = vector.multi_reduction <maximumf>, %28, %cst_13 [1] : vector<8x8xf32> to vector<8xf32>
    %30 = vector.shape_cast %29 : vector<8xf32> to vector<8x1xf32>
    %31 = vector.broadcast %30 : vector<8x1xf32> to vector<8x8xf32>
    %32 = arith.subf %28, %31 : vector<8x8xf32>
    %33 = math.exp %32 : vector<8x8xf32>
    %cst_14 = arith.constant dense<0.000000e+00> : vector<8xf32>
    %34 = vector.multi_reduction <add>, %33, %cst_14 [1] : vector<8x8xf32> to vector<8xf32>
    %35 = vector.shape_cast %34 : vector<8xf32> to vector<8x1xf32>
    %36 = tpu.reciprocal %35 {approx = true} : vector<8x1xf32> -> vector<8x1xf32>
    %37 = vector.broadcast %36 : vector<8x1xf32> to vector<8x8xf32>
    %38 = arith.mulf %33, %37 : vector<8x8xf32>
    %39 = arith.mulf %38, %27 : vector<8x8xf32>
    %40 = arith.mulf %20, %39 : vector<8x8xf32>
    %41 = arith.mulf %21, %39 : vector<8x8xf32>
    %cst_15 = arith.constant dense<0.000000e+00> : vector<8x8xf32>
    %42 = tpu.matmul %40, %14, %cst_15 {dimension_numbers = #tpu.dot_dimension_numbers<[1], [0], [0], [1], [0, 0, 1, 1], [], []>} : vector<8x8xf32>, vector<8x8xf32>, vector<8x8xf32> -> vector<8x8xf32>
    %cst_16 = arith.constant dense<0.000000e+00> : vector<8x8xf32>
    %43 = tpu.matmul %41, %15, %cst_16 {dimension_numbers = #tpu.dot_dimension_numbers<[1], [0], [0], [1], [0, 0, 1, 1], [], []>} : vector<8x8xf32>, vector<8x8xf32>, vector<8x8xf32> -> vector<8x8xf32>
    %44 = arith.subf %42, %43 : vector<8x8xf32>
    %cst_17 = arith.constant dense<0.000000e+00> : vector<8x8xf32>
    %45 = tpu.matmul %40, %15, %cst_17 {dimension_numbers = #tpu.dot_dimension_numbers<[1], [0], [0], [1], [0, 0, 1, 1], [], []>} : vector<8x8xf32>, vector<8x8xf32>, vector<8x8xf32> -> vector<8x8xf32>
    %cst_18 = arith.constant dense<0.000000e+00> : vector<8x8xf32>
    %46 = tpu.matmul %41, %14, %cst_18 {dimension_numbers = #tpu.dot_dimension_numbers<[1], [0], [0], [1], [0, 0, 1, 1], [], []>} : vector<8x8xf32>, vector<8x8xf32>, vector<8x8xf32> -> vector<8x8xf32>
    %47 = arith.addf %45, %46 : vector<8x8xf32>
    %48 = vector.extract_strided_slice %6 {offsets = [0, 16], sizes = [8, 16], strides = [1, 1]} : vector<8x64xf32> to vector<8x16xf32>
    %49 = vector.extract_strided_slice %7 {offsets = [0, 16], sizes = [8, 16], strides = [1, 1]} : vector<8x64xf32> to vector<8x16xf32>
    %50 = vector.extract_strided_slice %49 {offsets = [0, 0], sizes = [8, 8], strides = [1, 1]} : vector<8x16xf32> to vector<8x8xf32>
    %51 = vector.extract_strided_slice %49 {offsets = [0, 8], sizes = [8, 8], strides = [1, 1]} : vector<8x16xf32> to vector<8x8xf32>
    %52 = vector.extract_strided_slice %8 {offsets = [0, 16], sizes = [8, 16], strides = [1, 1]} : vector<8x64xf32> to vector<8x16xf32>
    %53 = vector.extract_strided_slice %52 {offsets = [0, 0], sizes = [8, 8], strides = [1, 1]} : vector<8x16xf32> to vector<8x8xf32>
    %54 = vector.extract_strided_slice %52 {offsets = [0, 8], sizes = [8, 8], strides = [1, 1]} : vector<8x16xf32> to vector<8x8xf32>
    %cst_19 = arith.constant 0.000000e+00 : f32
    %55 = vector.broadcast %cst_19 : f32 to vector<8x8xf32>
    %56 = arith.subf %55, %51 : vector<8x8xf32>
    %57 = tpu.concatenate %50, %56 in 1 : vector<8x8xf32>, vector<8x8xf32> -> vector<8x16xf32>
    %58 = tpu.concatenate %51, %50 in 1 : vector<8x8xf32>, vector<8x8xf32> -> vector<8x16xf32>
    %cst_20 = arith.constant dense<0.000000e+00> : vector<8x8xf32>
    %59 = tpu.matmul %48, %57, %cst_20 {dimension_numbers = #tpu.dot_dimension_numbers<[1], [1], [0], [0], [0, 0, 1, 0], [], []>} : vector<8x16xf32>, vector<8x16xf32>, vector<8x8xf32> -> vector<8x8xf32>
    %cst_21 = arith.constant dense<0.000000e+00> : vector<8x8xf32>
    %60 = tpu.matmul %48, %58, %cst_21 {dimension_numbers = #tpu.dot_dimension_numbers<[1], [1], [0], [0], [0, 0, 1, 0], [], []>} : vector<8x16xf32>, vector<8x16xf32>, vector<8x8xf32> -> vector<8x8xf32>
    %61 = arith.mulf %59, %59 : vector<8x8xf32>
    %62 = arith.mulf %60, %60 : vector<8x8xf32>
    %63 = arith.addf %61, %62 : vector<8x8xf32>
    %cst_22 = arith.constant 1.000000e-30 : f32
    %64 = vector.broadcast %cst_22 : f32 to vector<8x8xf32>
    %65 = arith.maximumf %63, %64 : vector<8x8xf32>
    %66 = math.rsqrt %65 : vector<8x8xf32>
    %67 = arith.mulf %63, %66 : vector<8x8xf32>
    %cst_23 = arith.constant dense<0xFF800000> : vector<8xf32>
    %68 = vector.multi_reduction <maximumf>, %67, %cst_23 [1] : vector<8x8xf32> to vector<8xf32>
    %69 = vector.shape_cast %68 : vector<8xf32> to vector<8x1xf32>
    %70 = vector.broadcast %69 : vector<8x1xf32> to vector<8x8xf32>
    %71 = arith.subf %67, %70 : vector<8x8xf32>
    %72 = math.exp %71 : vector<8x8xf32>
    %cst_24 = arith.constant dense<0.000000e+00> : vector<8xf32>
    %73 = vector.multi_reduction <add>, %72, %cst_24 [1] : vector<8x8xf32> to vector<8xf32>
    %74 = vector.shape_cast %73 : vector<8xf32> to vector<8x1xf32>
    %75 = tpu.reciprocal %74 {approx = true} : vector<8x1xf32> -> vector<8x1xf32>
    %76 = vector.broadcast %75 : vector<8x1xf32> to vector<8x8xf32>
    %77 = arith.mulf %72, %76 : vector<8x8xf32>
    %78 = arith.mulf %77, %66 : vector<8x8xf32>
    %79 = arith.mulf %59, %78 : vector<8x8xf32>
    %80 = arith.mulf %60, %78 : vector<8x8xf32>
    %cst_25 = arith.constant dense<0.000000e+00> : vector<8x8xf32>
    %81 = tpu.matmul %79, %53, %cst_25 {dimension_numbers = #tpu.dot_dimension_numbers<[1], [0], [0], [1], [0, 0, 1, 1], [], []>} : vector<8x8xf32>, vector<8x8xf32>, vector<8x8xf32> -> vector<8x8xf32>
    %cst_26 = arith.constant dense<0.000000e+00> : vector<8x8xf32>
    %82 = tpu.matmul %80, %54, %cst_26 {dimension_numbers = #tpu.dot_dimension_numbers<[1], [0], [0], [1], [0, 0, 1, 1], [], []>} : vector<8x8xf32>, vector<8x8xf32>, vector<8x8xf32> -> vector<8x8xf32>
    %83 = arith.subf %81, %82 : vector<8x8xf32>
    %cst_27 = arith.constant dense<0.000000e+00> : vector<8x8xf32>
    %84 = tpu.matmul %79, %54, %cst_27 {dimension_numbers = #tpu.dot_dimension_numbers<[1], [0], [0], [1], [0, 0, 1, 1], [], []>} : vector<8x8xf32>, vector<8x8xf32>, vector<8x8xf32> -> vector<8x8xf32>
    %cst_28 = arith.constant dense<0.000000e+00> : vector<8x8xf32>
    %85 = tpu.matmul %80, %53, %cst_28 {dimension_numbers = #tpu.dot_dimension_numbers<[1], [0], [0], [1], [0, 0, 1, 1], [], []>} : vector<8x8xf32>, vector<8x8xf32>, vector<8x8xf32> -> vector<8x8xf32>
    %86 = arith.addf %84, %85 : vector<8x8xf32>
    %87 = vector.extract_strided_slice %6 {offsets = [0, 32], sizes = [8, 16], strides = [1, 1]} : vector<8x64xf32> to vector<8x16xf32>
    %88 = vector.extract_strided_slice %7 {offsets = [0, 32], sizes = [8, 16], strides = [1, 1]} : vector<8x64xf32> to vector<8x16xf32>
    %89 = vector.extract_strided_slice %88 {offsets = [0, 0], sizes = [8, 8], strides = [1, 1]} : vector<8x16xf32> to vector<8x8xf32>
    %90 = vector.extract_strided_slice %88 {offsets = [0, 8], sizes = [8, 8], strides = [1, 1]} : vector<8x16xf32> to vector<8x8xf32>
    %91 = vector.extract_strided_slice %8 {offsets = [0, 32], sizes = [8, 16], strides = [1, 1]} : vector<8x64xf32> to vector<8x16xf32>
    %92 = vector.extract_strided_slice %91 {offsets = [0, 0], sizes = [8, 8], strides = [1, 1]} : vector<8x16xf32> to vector<8x8xf32>
    %93 = vector.extract_strided_slice %91 {offsets = [0, 8], sizes = [8, 8], strides = [1, 1]} : vector<8x16xf32> to vector<8x8xf32>
    %cst_29 = arith.constant 0.000000e+00 : f32
    %94 = vector.broadcast %cst_29 : f32 to vector<8x8xf32>
    %95 = arith.subf %94, %90 : vector<8x8xf32>
    %96 = tpu.concatenate %89, %95 in 1 : vector<8x8xf32>, vector<8x8xf32> -> vector<8x16xf32>
    %97 = tpu.concatenate %90, %89 in 1 : vector<8x8xf32>, vector<8x8xf32> -> vector<8x16xf32>
    %cst_30 = arith.constant dense<0.000000e+00> : vector<8x8xf32>
    %98 = tpu.matmul %87, %96, %cst_30 {dimension_numbers = #tpu.dot_dimension_numbers<[1], [1], [0], [0], [0, 0, 1, 0], [], []>} : vector<8x16xf32>, vector<8x16xf32>, vector<8x8xf32> -> vector<8x8xf32>
    %cst_31 = arith.constant dense<0.000000e+00> : vector<8x8xf32>
    %99 = tpu.matmul %87, %97, %cst_31 {dimension_numbers = #tpu.dot_dimension_numbers<[1], [1], [0], [0], [0, 0, 1, 0], [], []>} : vector<8x16xf32>, vector<8x16xf32>, vector<8x8xf32> -> vector<8x8xf32>
    %100 = arith.mulf %98, %98 : vector<8x8xf32>
    %101 = arith.mulf %99, %99 : vector<8x8xf32>
    %102 = arith.addf %100, %101 : vector<8x8xf32>
    %cst_32 = arith.constant 1.000000e-30 : f32
    %103 = vector.broadcast %cst_32 : f32 to vector<8x8xf32>
    %104 = arith.maximumf %102, %103 : vector<8x8xf32>
    %105 = math.rsqrt %104 : vector<8x8xf32>
    %106 = arith.mulf %102, %105 : vector<8x8xf32>
    %cst_33 = arith.constant dense<0xFF800000> : vector<8xf32>
    %107 = vector.multi_reduction <maximumf>, %106, %cst_33 [1] : vector<8x8xf32> to vector<8xf32>
    %108 = vector.shape_cast %107 : vector<8xf32> to vector<8x1xf32>
    %109 = vector.broadcast %108 : vector<8x1xf32> to vector<8x8xf32>
    %110 = arith.subf %106, %109 : vector<8x8xf32>
    %111 = math.exp %110 : vector<8x8xf32>
    %cst_34 = arith.constant dense<0.000000e+00> : vector<8xf32>
    %112 = vector.multi_reduction <add>, %111, %cst_34 [1] : vector<8x8xf32> to vector<8xf32>
    %113 = vector.shape_cast %112 : vector<8xf32> to vector<8x1xf32>
    %114 = tpu.reciprocal %113 {approx = true} : vector<8x1xf32> -> vector<8x1xf32>
    %115 = vector.broadcast %114 : vector<8x1xf32> to vector<8x8xf32>
    %116 = arith.mulf %111, %115 : vector<8x8xf32>
    %117 = arith.mulf %116, %105 : vector<8x8xf32>
    %118 = arith.mulf %98, %117 : vector<8x8xf32>
    %119 = arith.mulf %99, %117 : vector<8x8xf32>
    %cst_35 = arith.constant dense<0.000000e+00> : vector<8x8xf32>
    %120 = tpu.matmul %118, %92, %cst_35 {dimension_numbers = #tpu.dot_dimension_numbers<[1], [0], [0], [1], [0, 0, 1, 1], [], []>} : vector<8x8xf32>, vector<8x8xf32>, vector<8x8xf32> -> vector<8x8xf32>
    %cst_36 = arith.constant dense<0.000000e+00> : vector<8x8xf32>
    %121 = tpu.matmul %119, %93, %cst_36 {dimension_numbers = #tpu.dot_dimension_numbers<[1], [0], [0], [1], [0, 0, 1, 1], [], []>} : vector<8x8xf32>, vector<8x8xf32>, vector<8x8xf32> -> vector<8x8xf32>
    %122 = arith.subf %120, %121 : vector<8x8xf32>
    %cst_37 = arith.constant dense<0.000000e+00> : vector<8x8xf32>
    %123 = tpu.matmul %118, %93, %cst_37 {dimension_numbers = #tpu.dot_dimension_numbers<[1], [0], [0], [1], [0, 0, 1, 1], [], []>} : vector<8x8xf32>, vector<8x8xf32>, vector<8x8xf32> -> vector<8x8xf32>
    %cst_38 = arith.constant dense<0.000000e+00> : vector<8x8xf32>
    %124 = tpu.matmul %119, %92, %cst_38 {dimension_numbers = #tpu.dot_dimension_numbers<[1], [0], [0], [1], [0, 0, 1, 1], [], []>} : vector<8x8xf32>, vector<8x8xf32>, vector<8x8xf32> -> vector<8x8xf32>
    %125 = arith.addf %123, %124 : vector<8x8xf32>
    %126 = vector.extract_strided_slice %6 {offsets = [0, 48], sizes = [8, 16], strides = [1, 1]} : vector<8x64xf32> to vector<8x16xf32>
    %127 = vector.extract_strided_slice %7 {offsets = [0, 48], sizes = [8, 16], strides = [1, 1]} : vector<8x64xf32> to vector<8x16xf32>
    %128 = vector.extract_strided_slice %127 {offsets = [0, 0], sizes = [8, 8], strides = [1, 1]} : vector<8x16xf32> to vector<8x8xf32>
    %129 = vector.extract_strided_slice %127 {offsets = [0, 8], sizes = [8, 8], strides = [1, 1]} : vector<8x16xf32> to vector<8x8xf32>
    %130 = vector.extract_strided_slice %8 {offsets = [0, 48], sizes = [8, 16], strides = [1, 1]} : vector<8x64xf32> to vector<8x16xf32>
    %131 = vector.extract_strided_slice %130 {offsets = [0, 0], sizes = [8, 8], strides = [1, 1]} : vector<8x16xf32> to vector<8x8xf32>
    %132 = vector.extract_strided_slice %130 {offsets = [0, 8], sizes = [8, 8], strides = [1, 1]} : vector<8x16xf32> to vector<8x8xf32>
    %cst_39 = arith.constant 0.000000e+00 : f32
    %133 = vector.broadcast %cst_39 : f32 to vector<8x8xf32>
    %134 = arith.subf %133, %129 : vector<8x8xf32>
    %135 = tpu.concatenate %128, %134 in 1 : vector<8x8xf32>, vector<8x8xf32> -> vector<8x16xf32>
    %136 = tpu.concatenate %129, %128 in 1 : vector<8x8xf32>, vector<8x8xf32> -> vector<8x16xf32>
    %cst_40 = arith.constant dense<0.000000e+00> : vector<8x8xf32>
    %137 = tpu.matmul %126, %135, %cst_40 {dimension_numbers = #tpu.dot_dimension_numbers<[1], [1], [0], [0], [0, 0, 1, 0], [], []>} : vector<8x16xf32>, vector<8x16xf32>, vector<8x8xf32> -> vector<8x8xf32>
    %cst_41 = arith.constant dense<0.000000e+00> : vector<8x8xf32>
    %138 = tpu.matmul %126, %136, %cst_41 {dimension_numbers = #tpu.dot_dimension_numbers<[1], [1], [0], [0], [0, 0, 1, 0], [], []>} : vector<8x16xf32>, vector<8x16xf32>, vector<8x8xf32> -> vector<8x8xf32>
    %139 = arith.mulf %137, %137 : vector<8x8xf32>
    %140 = arith.mulf %138, %138 : vector<8x8xf32>
    %141 = arith.addf %139, %140 : vector<8x8xf32>
    %cst_42 = arith.constant 1.000000e-30 : f32
    %142 = vector.broadcast %cst_42 : f32 to vector<8x8xf32>
    %143 = arith.maximumf %141, %142 : vector<8x8xf32>
    %144 = math.rsqrt %143 : vector<8x8xf32>
    %145 = arith.mulf %141, %144 : vector<8x8xf32>
    %cst_43 = arith.constant dense<0xFF800000> : vector<8xf32>
    %146 = vector.multi_reduction <maximumf>, %145, %cst_43 [1] : vector<8x8xf32> to vector<8xf32>
    %147 = vector.shape_cast %146 : vector<8xf32> to vector<8x1xf32>
    %148 = vector.broadcast %147 : vector<8x1xf32> to vector<8x8xf32>
    %149 = arith.subf %145, %148 : vector<8x8xf32>
    %150 = math.exp %149 : vector<8x8xf32>
    %cst_44 = arith.constant dense<0.000000e+00> : vector<8xf32>
    %151 = vector.multi_reduction <add>, %150, %cst_44 [1] : vector<8x8xf32> to vector<8xf32>
    %152 = vector.shape_cast %151 : vector<8xf32> to vector<8x1xf32>
    %153 = tpu.reciprocal %152 {approx = true} : vector<8x1xf32> -> vector<8x1xf32>
    %154 = vector.broadcast %153 : vector<8x1xf32> to vector<8x8xf32>
    %155 = arith.mulf %150, %154 : vector<8x8xf32>
    %156 = arith.mulf %155, %144 : vector<8x8xf32>
    %157 = arith.mulf %137, %156 : vector<8x8xf32>
    %158 = arith.mulf %138, %156 : vector<8x8xf32>
    %cst_45 = arith.constant dense<0.000000e+00> : vector<8x8xf32>
    %159 = tpu.matmul %157, %131, %cst_45 {dimension_numbers = #tpu.dot_dimension_numbers<[1], [0], [0], [1], [0, 0, 1, 1], [], []>} : vector<8x8xf32>, vector<8x8xf32>, vector<8x8xf32> -> vector<8x8xf32>
    %cst_46 = arith.constant dense<0.000000e+00> : vector<8x8xf32>
    %160 = tpu.matmul %158, %132, %cst_46 {dimension_numbers = #tpu.dot_dimension_numbers<[1], [0], [0], [1], [0, 0, 1, 1], [], []>} : vector<8x8xf32>, vector<8x8xf32>, vector<8x8xf32> -> vector<8x8xf32>
    %161 = arith.subf %159, %160 : vector<8x8xf32>
    %cst_47 = arith.constant dense<0.000000e+00> : vector<8x8xf32>
    %162 = tpu.matmul %157, %132, %cst_47 {dimension_numbers = #tpu.dot_dimension_numbers<[1], [0], [0], [1], [0, 0, 1, 1], [], []>} : vector<8x8xf32>, vector<8x8xf32>, vector<8x8xf32> -> vector<8x8xf32>
    %cst_48 = arith.constant dense<0.000000e+00> : vector<8x8xf32>
    %163 = tpu.matmul %158, %131, %cst_48 {dimension_numbers = #tpu.dot_dimension_numbers<[1], [0], [0], [1], [0, 0, 1, 1], [], []>} : vector<8x8xf32>, vector<8x8xf32>, vector<8x8xf32> -> vector<8x8xf32>
    %164 = arith.addf %162, %163 : vector<8x8xf32>
    %165 = tpu.concatenate %44, %47, %83, %86, %122, %125, %161, %164 in 1 : vector<8x8xf32>, vector<8x8xf32>, vector<8x8xf32>, vector<8x8xf32>, vector<8x8xf32>, vector<8x8xf32>, vector<8x8xf32>, vector<8x8xf32> -> vector<8x64xf32>
    %c0_49 = arith.constant 0 : index
    %c0_50 = arith.constant 0 : index
    %166 = vector.load %arg8[%c0_49, %c0_50] : memref<64x256xf32, #tpu.memory_space<vmem>>, vector<64x256xf32>
    %cst_51 = arith.constant dense<0.000000e+00> : vector<8x256xf32>
    %167 = tpu.matmul %165, %166, %cst_51 {dimension_numbers = #tpu.dot_dimension_numbers<[1], [0], [0], [1], [0, 0, 1, 1], [], []>} : vector<8x64xf32>, vector<64x256xf32>, vector<8x256xf32> -> vector<8x256xf32>
    %168 = vector.extract_strided_slice %167 {offsets = [0, 0], sizes = [8, 128], strides = [1, 1]} : vector<8x256xf32> to vector<8x128xf32>
    %169 = vector.extract_strided_slice %4 {offsets = [0, 0], sizes = [8, 128], strides = [1, 1]} : vector<8x256xf32> to vector<8x128xf32>
    %170 = arith.addf %168, %169 : vector<8x128xf32>
    %171 = vector.extract_strided_slice %167 {offsets = [0, 128], sizes = [8, 128], strides = [1, 1]} : vector<8x256xf32> to vector<8x128xf32>
    %172 = vector.extract_strided_slice %4 {offsets = [0, 128], sizes = [8, 128], strides = [1, 1]} : vector<8x256xf32> to vector<8x128xf32>
    %173 = arith.addf %171, %172 : vector<8x128xf32>
    %174 = tpu.iota {dimensions = array<i32: 1>} : vector<1x128xi32>
    %c32_i32 = arith.constant 32 : i32
    %175 = vector.broadcast %c32_i32 : i32 to vector<1x128xi32>
    %176 = arith.cmpi slt, %174, %175 : vector<1x128xi32>
    %177 = arith.extui %176 : vector<1x128xi1> to vector<1x128xi32>
    %178 = arith.sitofp %177 : vector<1x128xi32> to vector<1x128xf32>
    %179 = vector.broadcast %178 : vector<1x128xf32> to vector<8x128xf32>
    %180 = arith.mulf %170, %179 : vector<8x128xf32>
    %cst_52 = arith.constant dense<0.000000e+00> : vector<8xf32>
    %181 = vector.multi_reduction <add>, %180, %cst_52 [1] : vector<8x128xf32> to vector<8xf32>
    %182 = vector.shape_cast %181 : vector<8xf32> to vector<8x1xf32>
    %cst_53 = arith.constant 3.125000e-02 : f32
    %183 = vector.broadcast %cst_53 : f32 to vector<8x1xf32>
    %184 = arith.mulf %182, %183 : vector<8x1xf32>
    %185 = vector.broadcast %178 : vector<1x128xf32> to vector<8x128xf32>
    %186 = arith.mulf %173, %185 : vector<8x128xf32>
    %cst_54 = arith.constant dense<0.000000e+00> : vector<8xf32>
    %187 = vector.multi_reduction <add>, %186, %cst_54 [1] : vector<8x128xf32> to vector<8xf32>
    %188 = vector.shape_cast %187 : vector<8xf32> to vector<8x1xf32>
    %cst_55 = arith.constant 3.125000e-02 : f32
    %189 = vector.broadcast %cst_55 : f32 to vector<8x1xf32>
    %190 = arith.mulf %188, %189 : vector<8x1xf32>
    %191 = vector.broadcast %184 : vector<8x1xf32> to vector<8x128xf32>
    %192 = arith.subf %170, %191 : vector<8x128xf32>
    %193 = vector.broadcast %178 : vector<1x128xf32> to vector<8x128xf32>
    %194 = arith.mulf %192, %193 : vector<8x128xf32>
    %195 = vector.broadcast %190 : vector<8x1xf32> to vector<8x128xf32>
    %196 = arith.subf %173, %195 : vector<8x128xf32>
    %197 = vector.broadcast %178 : vector<1x128xf32> to vector<8x128xf32>
    %198 = arith.mulf %196, %197 : vector<8x128xf32>
    %199 = arith.mulf %194, %194 : vector<8x128xf32>
    %cst_56 = arith.constant dense<0.000000e+00> : vector<8xf32>
    %200 = vector.multi_reduction <add>, %199, %cst_56 [1] : vector<8x128xf32> to vector<8xf32>
    %201 = vector.shape_cast %200 : vector<8xf32> to vector<8x1xf32>
    %cst_57 = arith.constant 3.125000e-02 : f32
    %202 = vector.broadcast %cst_57 : f32 to vector<8x1xf32>
    %203 = arith.mulf %201, %202 : vector<8x1xf32>
    %cst_58 = arith.constant 9.99999997E-7 : f32
    %204 = vector.broadcast %cst_58 : f32 to vector<8x1xf32>
    %205 = arith.addf %203, %204 : vector<8x1xf32>
    %206 = arith.mulf %198, %198 : vector<8x128xf32>
    %cst_59 = arith.constant dense<0.000000e+00> : vector<8xf32>
    %207 = vector.multi_reduction <add>, %206, %cst_59 [1] : vector<8x128xf32> to vector<8xf32>
    %208 = vector.shape_cast %207 : vector<8xf32> to vector<8x1xf32>
    %cst_60 = arith.constant 3.125000e-02 : f32
    %209 = vector.broadcast %cst_60 : f32 to vector<8x1xf32>
    %210 = arith.mulf %208, %209 : vector<8x1xf32>
    %cst_61 = arith.constant 9.99999997E-7 : f32
    %211 = vector.broadcast %cst_61 : f32 to vector<8x1xf32>
    %212 = arith.addf %210, %211 : vector<8x1xf32>
    %213 = arith.mulf %194, %198 : vector<8x128xf32>
    %cst_62 = arith.constant dense<0.000000e+00> : vector<8xf32>
    %214 = vector.multi_reduction <add>, %213, %cst_62 [1] : vector<8x128xf32> to vector<8xf32>
    %215 = vector.shape_cast %214 : vector<8xf32> to vector<8x1xf32>
    %cst_63 = arith.constant 3.125000e-02 : f32
    %216 = vector.broadcast %cst_63 : f32 to vector<8x1xf32>
    %217 = arith.mulf %215, %216 : vector<8x1xf32>
    %218 = arith.mulf %205, %212 : vector<8x1xf32>
    %219 = arith.mulf %217, %217 : vector<8x1xf32>
    %220 = arith.subf %218, %219 : vector<8x1xf32>
    %cst_64 = arith.constant 0.000000e+00 : f32
    %221 = vector.broadcast %cst_64 : f32 to vector<8x1xf32>
    %222 = arith.maximumf %220, %221 : vector<8x1xf32>
    %223 = math.sqrt %222 : vector<8x1xf32>
    %224 = arith.addf %205, %212 : vector<8x1xf32>
    %cst_65 = arith.constant 2.000000e+00 : f32
    %225 = vector.broadcast %cst_65 : f32 to vector<8x1xf32>
    %226 = arith.mulf %225, %223 : vector<8x1xf32>
    %227 = arith.addf %224, %226 : vector<8x1xf32>
    %228 = math.sqrt %227 : vector<8x1xf32>
    %229 = arith.mulf %223, %228 : vector<8x1xf32>
    %230 = tpu.reciprocal %229 : vector<8x1xf32> -> vector<8x1xf32>
    %231 = arith.addf %212, %223 : vector<8x1xf32>
    %232 = arith.mulf %231, %230 : vector<8x1xf32>
    %233 = arith.addf %205, %223 : vector<8x1xf32>
    %234 = arith.mulf %233, %230 : vector<8x1xf32>
    %cst_66 = arith.constant 0.000000e+00 : f32
    %235 = vector.broadcast %cst_66 : f32 to vector<8x1xf32>
    %236 = arith.subf %235, %217 : vector<8x1xf32>
    %237 = arith.mulf %236, %230 : vector<8x1xf32>
    %238 = vector.broadcast %232 : vector<8x1xf32> to vector<8x128xf32>
    %239 = arith.mulf %238, %194 : vector<8x128xf32>
    %240 = vector.broadcast %237 : vector<8x1xf32> to vector<8x128xf32>
    %241 = arith.mulf %240, %198 : vector<8x128xf32>
    %242 = arith.addf %239, %241 : vector<8x128xf32>
    %243 = vector.broadcast %237 : vector<8x1xf32> to vector<8x128xf32>
    %244 = arith.mulf %243, %194 : vector<8x128xf32>
    %245 = vector.broadcast %234 : vector<8x1xf32> to vector<8x128xf32>
    %246 = arith.mulf %245, %198 : vector<8x128xf32>
    %247 = arith.addf %244, %246 : vector<8x128xf32>
    %c0_67 = arith.constant 0 : index
    %c0_68 = arith.constant 0 : index
    %248 = vector.load %arg9[%c0_67, %c0_68] : memref<4x128xf32, #tpu.memory_space<vmem>>, vector<4x128xf32>
    %c0_69 = arith.constant 0 : index
    %c0_70 = arith.constant 0 : index
    %249 = vector.load %arg10[%c0_69, %c0_70] : memref<2x128xf32, #tpu.memory_space<vmem>>, vector<2x128xf32>
    %250 = vector.extract_strided_slice %248 {offsets = [0, 0], sizes = [1, 128], strides = [1, 1]} : vector<4x128xf32> to vector<1x128xf32>
    %251 = vector.broadcast %250 : vector<1x128xf32> to vector<8x128xf32>
    %252 = arith.mulf %251, %242 : vector<8x128xf32>
    %253 = vector.extract_strided_slice %248 {offsets = [1, 0], sizes = [1, 128], strides = [1, 1]} : vector<4x128xf32> to vector<1x128xf32>
    %254 = vector.broadcast %253 : vector<1x128xf32> to vector<8x128xf32>
    %255 = arith.mulf %254, %247 : vector<8x128xf32>
    %256 = arith.addf %252, %255 : vector<8x128xf32>
    %257 = vector.extract_strided_slice %249 {offsets = [0, 0], sizes = [1, 128], strides = [1, 1]} : vector<2x128xf32> to vector<1x128xf32>
    %258 = vector.broadcast %257 : vector<1x128xf32> to vector<8x128xf32>
    %259 = arith.addf %256, %258 : vector<8x128xf32>
    %c0_71 = arith.constant 0 : index
    %c0_72 = arith.constant 0 : index
    %c0_73 = arith.constant 0 : index
    %260 = vector.load %arg11[%c0_71, %c0_72, %c0_73] : memref<1x8x128xf32, #tpu.memory_space<vmem>>, vector<1x8x128xf32>
    %261 = vector.shape_cast %260 : vector<1x8x128xf32> to vector<8x128xf32>
    %262 = vector.shape_cast %259 : vector<8x128xf32> to vector<1x8x128xf32>
    tpu.vector_store %arg11[%c0_71, %c0_72, %c0_73], %262 {strides = array<i32>} : memref<1x8x128xf32, #tpu.memory_space<vmem>>, vector<1x8x128xf32>,
    %263 = vector.extract_strided_slice %248 {offsets = [2, 0], sizes = [1, 128], strides = [1, 1]} : vector<4x128xf32> to vector<1x128xf32>
    %264 = vector.broadcast %263 : vector<1x128xf32> to vector<8x128xf32>
    %265 = arith.mulf %264, %242 : vector<8x128xf32>
    %266 = vector.extract_strided_slice %248 {offsets = [3, 0], sizes = [1, 128], strides = [1, 1]} : vector<4x128xf32> to vector<1x128xf32>
    %267 = vector.broadcast %266 : vector<1x128xf32> to vector<8x128xf32>
    %268 = arith.mulf %267, %247 : vector<8x128xf32>
    %269 = arith.addf %265, %268 : vector<8x128xf32>
    %270 = vector.extract_strided_slice %249 {offsets = [1, 0], sizes = [1, 128], strides = [1, 1]} : vector<2x128xf32> to vector<1x128xf32>
    %271 = vector.broadcast %270 : vector<1x128xf32> to vector<8x128xf32>
    %272 = arith.addf %269, %271 : vector<8x128xf32>
    %c0_74 = arith.constant 0 : index
    %c0_75 = arith.constant 0 : index
    %c0_76 = arith.constant 0 : index
    %273 = vector.load %arg12[%c0_74, %c0_75, %c0_76] : memref<1x8x128xf32, #tpu.memory_space<vmem>>, vector<1x8x128xf32>
    %274 = vector.shape_cast %273 : vector<1x8x128xf32> to vector<8x128xf32>
    %275 = vector.shape_cast %272 : vector<8x128xf32> to vector<1x8x128xf32>
    tpu.vector_store %arg12[%c0_74, %c0_75, %c0_76], %275 {strides = array<i32>} : memref<1x8x128xf32, #tpu.memory_space<vmem>>, vector<1x8x128xf32>,
    return
  }
  func.func @transform_0(%arg0: i32, %arg1: i32) -> (i32, i32, i32) {
    %c0_i32 = arith.constant 0 : i32
    %c0_i32_0 = arith.constant 0 : i32
    return %arg0, %arg1, %c0_i32 : i32, i32, i32
  }
  func.func @transform_1(%arg0: i32, %arg1: i32) -> (i32, i32, i32) {
    %c0_i32 = arith.constant 0 : i32
    %c0_i32_0 = arith.constant 0 : i32
    %c0_i32_1 = arith.constant 0 : i32
    return %arg0, %c0_i32, %c0_i32_0 : i32, i32, i32
  }
  func.func @transform_2(%arg0: i32, %arg1: i32) -> (i32, i32, i32) {
    %c0_i32 = arith.constant 0 : i32
    %c0_i32_0 = arith.constant 0 : i32
    %c0_i32_1 = arith.constant 0 : i32
    return %arg0, %c0_i32, %c0_i32_0 : i32, i32, i32
  }
  func.func @transform_3(%arg0: i32, %arg1: i32) -> (i32, i32) {
    %c0_i32 = arith.constant 0 : i32
    %c0_i32_0 = arith.constant 0 : i32
    %c0_i32_1 = arith.constant 0 : i32
    return %c0_i32, %c0_i32_0 : i32, i32
  }
  func.func @transform_4(%arg0: i32, %arg1: i32) -> (i32, i32) {
    %c0_i32 = arith.constant 0 : i32
    %c0_i32_0 = arith.constant 0 : i32
    %c0_i32_1 = arith.constant 0 : i32
    return %c0_i32, %c0_i32_0 : i32, i32
  }
  func.func @transform_5(%arg0: i32, %arg1: i32) -> (i32, i32) {
    %c0_i32 = arith.constant 0 : i32
    %c0_i32_0 = arith.constant 0 : i32
    %c0_i32_1 = arith.constant 0 : i32
    return %c0_i32, %c0_i32_0 : i32, i32
  }
  func.func @transform_6(%arg0: i32, %arg1: i32) -> (i32, i32) {
    %c0_i32 = arith.constant 0 : i32
    %c0_i32_0 = arith.constant 0 : i32
    %c0_i32_1 = arith.constant 0 : i32
    return %c0_i32, %c0_i32_0 : i32, i32
  }
  func.func @transform_7(%arg0: i32, %arg1: i32) -> (i32, i32) {
    %c0_i32 = arith.constant 0 : i32
    %c0_i32_0 = arith.constant 0 : i32
    %c0_i32_1 = arith.constant 0 : i32
    return %c0_i32, %c0_i32_0 : i32, i32
  }
  func.func @transform_8(%arg0: i32, %arg1: i32) -> (i32, i32) {
    %c0_i32 = arith.constant 0 : i32
    %c0_i32_0 = arith.constant 0 : i32
    %c0_i32_1 = arith.constant 0 : i32
    return %c0_i32, %c0_i32_0 : i32, i32
  }
  func.func @transform_9(%arg0: i32, %arg1: i32) -> (i32, i32, i32) {
    %c0_i32 = arith.constant 0 : i32
    %c0_i32_0 = arith.constant 0 : i32
    return %arg0, %arg1, %c0_i32 : i32, i32, i32
  }
  func.func @transform_10(%arg0: i32, %arg1: i32) -> (i32, i32, i32) {
    %c0_i32 = arith.constant 0 : i32
    %c0_i32_0 = arith.constant 0 : i32
    return %arg0, %arg1, %c0_i32 : i32, i32, i32
  }
}

</mosaic_0001>

<llo_original>
// kernel: cv_multihead_attention.1
$region0: #{cv_multihead_attention.1}
  #allocation0 [shape = 'u32[]', space=smem, size = 0x4, offset = 0x4, fixed_abs, tag = 'smem constant byte address 0x4 - core index']
  #allocation1 [shape = 'u32[72,128]{1,0:T(1,128)}', space=vmem, size = 0x9000, scoped, tag = 'internal scratch']
  #allocation2 [shape = 'f32[8,64]{1,0:T(8,128)}', space=vmem, size = 0x1000, scoped, tag = 'scratch operand']
  #allocation3 [shape = 'f32[8,64]{1,0:T(8,128)}', space=vmem, size = 0x1000, scoped, tag = 'scratch operand']
  %s0 = inlined_call_operand.vmem [shape: f32[2,8,256], index: 0, kind: input, shape index: {}]
  %s1 = inlined_call_operand.vmem [shape: f32[2,8,256], index: 1, kind: input, shape index: {}]
  %s2 = inlined_call_operand.vmem [shape: f32[2,8,256], index: 2, kind: input, shape index: {}]
  %s3 = inlined_call_operand.vmem [shape: f32[256,64], index: 3, kind: input, shape index: {}]
  %s4 = inlined_call_operand.vmem [shape: f32[256,64], index: 4, kind: input, shape index: {}]
  %s5 = inlined_call_operand.vmem [shape: f32[256,64], index: 5, kind: input, shape index: {}]
  %s6 = inlined_call_operand.vmem [shape: f32[64,256], index: 6, kind: input, shape index: {}]
  %s7 = inlined_call_operand.vmem [shape: f32[4,128], index: 7, kind: input, shape index: {}]
  %s8 = inlined_call_operand.vmem [shape: f32[2,128], index: 8, kind: input, shape index: {}]
  %s9 = inlined_call_operand.hbm [shape: f32[2,8,128], index: 9, kind: output, shape index: {0}]
  %s10 = inlined_call_operand.hbm [shape: f32[2,8,128], index: 10, kind: output, shape index: {1}]
  %11 = xla_tuple %s9, %s10
  %s12 = sld [smem:[#allocation0]]
  $region81: #{cv_multihead_attention.1} parent=0
    _
  %s14 = ssub.s32 1, %s12
  %s15 = scalar_select 0, %s14, %s12
  $region1: #{cv_multihead_attention.1} parent=0
    #allocation4 [shape = 'u8[8192]{0}', space=vmem, size = 0x2000, scoped, tag = 'output window, operand 0']
    #allocation5 [shape = 's32[2]{0}', space=sflag, size = 0x8, scoped, tag = 'scoped memory for cv_multihead_attention.1']
    #allocation6 [shape = 'u8[8192]{0}', space=vmem, size = 0x2000, scoped, tag = 'output window, operand 1']
    #allocation7 [shape = 's32[2]{0}', space=sflag, size = 0x8, scoped, tag = 'scoped memory for cv_multihead_attention.1']
    %16 = vsyncpa [#allocation5], 0
    %s17 = scalar_lea.sflag [#allocation5], 1
    %18 = vsyncpa %s17, 0
    %19 = vsyncpa [#allocation7], 0
    %s20 = scalar_lea.sflag [#allocation7], 1
    %21 = vsyncpa %s20, 0
    loop: start=0, step=1, limit=4
    $region2: #{cv_multihead_attention.1} parent=1 // loop_pre_header
      _
    $region3: #{cv_multihead_attention.1} parent=1 // loop_header
      %s23 = sphi 0, %s27
      %p24 = scmp.ge.s32.totalorder %s23, 4
      %s30 = sphi 0, %s42
      %s31 = sphi 0, %s38
      %s32 = sphi 0, %s30
      %s33 = sphi 0, %s31
      %s34 = sphi 0, %s32
      %s35 = sphi 0, %s33
      %s47 = sphi 0, %s49
      %s50 = sphi 0, %s47
      %s51 = sphi 0, %s50
      %s67 = sphi 0, %s51
      %s73 = sphi 0, %s75
      %s76 = sphi 0, %s73
      %s77 = sphi 0, %s76
      %s93 = sphi 0, %s77
      %s99 = sphi 0, %s101
      %s102 = sphi 0, %s99
      %s103 = sphi 0, %s102
      %s119 = sphi 0, %s103
      %s123 = sphi 0, %s123
      %s125 = sphi 0, %s123
      %s126 = sphi 0, %s125
      %s140 = sphi 0, %s126
      %s144 = sphi 0, %s144
      %s146 = sphi 0, %s144
      %s147 = sphi 0, %s146
      %s161 = sphi 0, %s147
      %s165 = sphi 0, %s165
      %s167 = sphi 0, %s165
      %s168 = sphi 0, %s167
      %s182 = sphi 0, %s168
      %s186 = sphi 0, %s186
      %s188 = sphi 0, %s186
      %s189 = sphi 0, %s188
      %s203 = sphi 0, %s189
      %s207 = sphi 0, %s207
      %s209 = sphi 0, %s207
      %s210 = sphi 0, %s209
      %s224 = sphi 0, %s210
      %s228 = sphi 0, %s228
      %s230 = sphi 0, %s228
      %s231 = sphi 0, %s230
      %s245 = sphi 0, %s231
      %s253 = sphi 0, %s255
      %s256 = sphi 0, %s253
      %s257 = sphi 0, %s256
      %s273 = sphi 0, %s257
      %s281 = sphi 0, %s283
      %s284 = sphi 0, %s281
      %s285 = sphi 0, %s284
      %s301 = sphi 0, %s285
    $region4: #{cv_multihead_attention.1} parent=1 // loop_header_branch
      %26 = sbr.rel (%p24) target = $region8
    $region5: #{cv_multihead_attention.1} parent=1 // loop_body
      %s28 = ssub.s32 %s23, 1
      %s29 = ssub.s32 %s23, 2
      %s36 = sadd.s32 1, %s31
      %p37 = scmp.ge.s32.totalorder %s36, 1
      %s38 = scalar_select %p37, 0, %s36
      %s39 = sadd.s32 1, %s30
      %s40 = scalar_select %p37, %s39, %s30
      %p41 = scmp.ge.s32.totalorder %s40, 2
      %s42 = scalar_select %p41, 0, %s40
      %s43 = ssub.s32 %s30, %s42
      %s44 = ssub.s32 %s31, %s38
      %s45 = sor.u32 %s43, %s44
      %p46 = scmp.eq.s32.totalorder %s45, 0
      %s48 = sadd.s32 %s47, 1
      %s49 = scalar_select %p46, %s47, %s48
      %p52 = pneg %p46
      %p53 = scmp.eq.s32.totalorder %s23, 1
      %p54 = por %p52, %p53
      %p55 = scmp.ne.s32.totalorder %s47, %s50
      %p56 = scmp.eq.s32.totalorder %s23, 0
      %p57 = por %p55, %p56
      %p58 = scmp.ne.s32.totalorder %s47, %s50
      %p59 = scmp.eq.s32.totalorder %s28, 1
      %p60 = por %p58, %p59
      %p61 = scmp.ne.s32.totalorder %s50, %s51
      %p62 = scmp.eq.s32.totalorder %s28, 0
      %p63 = por %p61, %p62
      %p64 = scmp.ne.s32.totalorder %s50, %s51
      %p65 = scmp.eq.s32.totalorder %s29, 1
      %p66 = por %p64, %p65
      %p68 = scmp.ne.s32.totalorder %s51, %s67
      %p69 = scmp.eq.s32.totalorder %s29, 0
      %p70 = por %p68, %p69
      %s71 = ssub.s32 %s30, %s42
      %p72 = scmp.eq.s32.totalorder %s71, 0
      %s74 = sadd.s32 %s73, 1
      %s75 = scalar_select %p72, %s73, %s74
      %p78 = pneg %p72
      %p79 = scmp.eq.s32.totalorder %s23, 1
      %p80 = por %p78, %p79
      %p81 = scmp.ne.s32.totalorder %s73, %s76
      %p82 = scmp.eq.s32.totalorder %s23, 0
      %p83 = por %p81, %p82
      %p84 = scmp.ne.s32.totalorder %s73, %s76
      %p85 = scmp.eq.s32.totalorder %s28, 1
      %p86 = por %p84, %p85
      %p87 = scmp.ne.s32.totalorder %s76, %s77
      %p88 = scmp.eq.s32.totalorder %s28, 0
      %p89 = por %p87, %p88
      %p90 = scmp.ne.s32.totalorder %s76, %s77
      %p91 = scmp.eq.s32.totalorder %s29, 1
      %p92 = por %p90, %p91
      %p94 = scmp.ne.s32.totalorder %s77, %s93
      %p95 = scmp.eq.s32.totalorder %s29, 0
      %p96 = por %p94, %p95
      %s97 = ssub.s32 %s30, %s42
      %p98 = scmp.eq.s32.totalorder %s97, 0
      %s100 = sadd.s32 %s99, 1
      %s101 = scalar_select %p98, %s99, %s100
      %p104 = pneg %p98
      %p105 = scmp.eq.s32.totalorder %s23, 1
      %p106 = por %p104, %p105
      %p107 = scmp.ne.s32.totalorder %s99, %s102
      %p108 = scmp.eq.s32.totalorder %s23, 0
      %p109 = por %p107, %p108
      %p110 = scmp.ne.s32.totalorder %s99, %s102
      %p111 = scmp.eq.s32.totalorder %s28, 1
      %p112 = por %p110, %p111
      %p113 = scmp.ne.s32.totalorder %s102, %s103
      %p114 = scmp.eq.s32.totalorder %s28, 0
      %p115 = por %p113, %p114
      %p116 = scmp.ne.s32.totalorder %s102, %s103
      %p117 = scmp.eq.s32.totalorder %s29, 1
      %p118 = por %p116, %p117
      %p120 = scmp.ne.s32.totalorder %s103, %s119
      %p121 = scmp.eq.s32.totalorder %s29, 0
      %p122 = por %p120, %p121
      %s124 = sadd.s32 %s123, 1
      %p127 = scmp.eq.s32.totalorder %s23, 1
      %p128 = scmp.ne.s32.totalorder %s123, %s125
      %p129 = scmp.eq.s32.totalorder %s23, 0
      %p130 = por %p128, %p129
      %p131 = scmp.ne.s32.totalorder %s123, %s125
      %p132 = scmp.eq.s32.totalorder %s28, 1
      %p133 = por %p131, %p132
      %p134 = scmp.ne.s32.totalorder %s125, %s126
      %p135 = scmp.eq.s32.totalorder %s28, 0
      %p136 = por %p134, %p135
      %p137 = scmp.ne.s32.totalorder %s125, %s126
      %p138 = scmp.eq.s32.totalorder %s29, 1
      %p139 = por %p137, %p138
      %p141 = scmp.ne.s32.totalorder %s126, %s140
      %p142 = scmp.eq.s32.totalorder %s29, 0
      %p143 = por %p141, %p142
      %s145 = sadd.s32 %s144, 1
      %p148 = scmp.eq.s32.totalorder %s23, 1
      %p149 = scmp.ne.s32.totalorder %s144, %s146
      %p150 = scmp.eq.s32.totalorder %s23, 0
      %p151 = por %p149, %p150
      %p152 = scmp.ne.s32.totalorder %s144, %s146
      %p153 = scmp.eq.s32.totalorder %s28, 1
      %p154 = por %p152, %p153
      %p155 = scmp.ne.s32.totalorder %s146, %s147
      %p156 = scmp.eq.s32.totalorder %s28, 0
      %p157 = por %p155, %p156
      %p158 = scmp.ne.s32.totalorder %s146, %s147
      %p159 = scmp.eq.s32.totalorder %s29, 1
      %p160 = por %p158, %p159
      %p162 = scmp.ne.s32.totalorder %s147, %s161
      %p163 = scmp.eq.s32.totalorder %s29, 0
      %p164 = por %p162, %p163
      %s166 = sadd.s32 %s165, 1
      %p169 = scmp.eq.s32.totalorder %s23, 1
      %p170 = scmp.ne.s32.totalorder %s165, %s167
      %p171 = scmp.eq.s32.totalorder %s23, 0
      %p172 = por %p170, %p171
      %p173 = scmp.ne.s32.totalorder %s165, %s167
      %p174 = scmp.eq.s32.totalorder %s28, 1
      %p175 = por %p173, %p174
      %p176 = scmp.ne.s32.totalorder %s167, %s168
      %p177 = scmp.eq.s32.totalorder %s28, 0
      %p178 = por %p176, %p177
      %p179 = scmp.ne.s32.totalorder %s167, %s168
      %p180 = scmp.eq.s32.totalorder %s29, 1
      %p181 = por %p179, %p180
      %p183 = scmp.ne.s32.totalorder %s168, %s182
      %p184 = scmp.eq.s32.totalorder %s29, 0
      %p185 = por %p183, %p184
      %s187 = sadd.s32 %s186, 1
      %p190 = scmp.eq.s32.totalorder %s23, 1
      %p191 = scmp.ne.s32.totalorder %s186, %s188
      %p192 = scmp.eq.s32.totalorder %s23, 0
      %p193 = por %p191, %p192
      %p194 = scmp.ne.s32.totalorder %s186, %s188
      %p195 = scmp.eq.s32.totalorder %s28, 1
      %p196 = por %p194, %p195
      %p197 = scmp.ne.s32.totalorder %s188, %s189
      %p198 = scmp.eq.s32.totalorder %s28, 0
      %p199 = por %p197, %p198
      %p200 = scmp.ne.s32.totalorder %s188, %s189
      %p201 = scmp.eq.s32.totalorder %s29, 1
      %p202 = por %p200, %p201
      %p204 = scmp.ne.s32.totalorder %s189, %s203
      %p205 = scmp.eq.s32.totalorder %s29, 0
      %p206 = por %p204, %p205
      %s208 = sadd.s32 %s207, 1
      %p211 = scmp.eq.s32.totalorder %s23, 1
      %p212 = scmp.ne.s32.totalorder %s207, %s209
      %p213 = scmp.eq.s32.totalorder %s23, 0
      %p214 = por %p212, %p213
      %p215 = scmp.ne.s32.totalorder %s207, %s209
      %p216 = scmp.eq.s32.totalorder %s28, 1
      %p217 = por %p215, %p216
      %p218 = scmp.ne.s32.totalorder %s209, %s210
      %p219 = scmp.eq.s32.totalorder %s28, 0
      %p220 = por %p218, %p219
      %p221 = scmp.ne.s32.totalorder %s209, %s210
      %p222 = scmp.eq.s32.totalorder %s29, 1
      %p223 = por %p221, %p222
      %p225 = scmp.ne.s32.totalorder %s210, %s224
      %p226 = scmp.eq.s32.totalorder %s29, 0
      %p227 = por %p225, %p226
      %s229 = sadd.s32 %s228, 1
      %p232 = scmp.eq.s32.totalorder %s23, 1
      %p233 = scmp.ne.s32.totalorder %s228, %s230
      %p234 = scmp.eq.s32.totalorder %s23, 0
      %p235 = por %p233, %p234
      %p236 = scmp.ne.s32.totalorder %s228, %s230
      %p237 = scmp.eq.s32.totalorder %s28, 1
      %p238 = por %p236, %p237
      %p239 = scmp.ne.s32.totalorder %s230, %s231
      %p240 = scmp.eq.s32.totalorder %s28, 0
      %p241 = por %p239, %p240
      %p242 = scmp.ne.s32.totalorder %s230, %s231
      %p243 = scmp.eq.s32.totalorder %s29, 1
      %p244 = por %p242, %p243
      %p246 = scmp.ne.s32.totalorder %s231, %s245
      %p247 = scmp.eq.s32.totalorder %s29, 0
      %p248 = por %p246, %p247
      %s249 = ssub.s32 %s30, %s42
      %s250 = ssub.s32 %s31, %s38
      %s251 = sor.u32 %s249, %s250
      %p252 = scmp.eq.s32.totalorder %s251, 0
      %s254 = sadd.s32 %s253, 1
      %s255 = scalar_select %p252, %s253, %s254
      %p258 = pneg %p252
      %p259 = scmp.eq.s32.totalorder %s23, 1
      %p260 = por %p258, %p259
      %p261 = scmp.ne.s32.totalorder %s253, %s256
      %p262 = scmp.eq.s32.totalorder %s23, 0
      %p263 = por %p261, %p262
      %p264 = scmp.ne.s32.totalorder %s253, %s256
      %p265 = scmp.eq.s32.totalorder %s28, 1
      %p266 = por %p264, %p265
      %p267 = scmp.ne.s32.totalorder %s256, %s257
      %p268 = scmp.eq.s32.totalorder %s28, 0
      %p269 = por %p267, %p268
      %p270 = scmp.ne.s32.totalorder %s256, %s257
      %p271 = scmp.eq.s32.totalorder %s29, 1
      %p272 = por %p270, %p271
      %p274 = scmp.ne.s32.totalorder %s257, %s273
      %p275 = scmp.eq.s32.totalorder %s29, 0
      %p276 = por %p274, %p275
      %s277 = ssub.s32 %s30, %s42
      %s278 = ssub.s32 %s31, %s38
      %s279 = sor.u32 %s277, %s278
      %p280 = scmp.eq.s32.totalorder %s279, 0
      %s282 = sadd.s32 %s281, 1
      %s283 = scalar_select %p280, %s281, %s282
      %p286 = pneg %p280
      %p287 = scmp.eq.s32.totalorder %s23, 1
      %p288 = por %p286, %p287
      %p289 = scmp.ne.s32.totalorder %s281, %s284
      %p290 = scmp.eq.s32.totalorder %s23, 0
      %p291 = por %p289, %p290
      %p292 = scmp.ne.s32.totalorder %s281, %s284
      %p293 = scmp.eq.s32.totalorder %s28, 1
      %p294 = por %p292, %p293
      %p295 = scmp.ne.s32.totalorder %s284, %s285
      %p296 = scmp.eq.s32.totalorder %s28, 0
      %p297 = por %p295, %p296
      %p298 = scmp.ne.s32.totalorder %s284, %s285
      %p299 = scmp.eq.s32.totalorder %s29, 1
      %p300 = por %p298, %p299
      %p302 = scmp.ne.s32.totalorder %s285, %s301
      %p303 = scmp.eq.s32.totalorder %s29, 0
      %p304 = por %p302, %p303
      %p305 = scmp.le.s32.totalorder 1, %s23
      %p306 = scmp.lt.s32.totalorder %s23, 3
      %p307 = pnand %p305, %p306
      %p308 = pneg %p307
      // Predicated region
      $region9: #{cv_multihead_attention.1} parent=5 // pred_check
        _
      $region10: #{cv_multihead_attention.1} parent=5 // pred_check_branch
        %310 = sbr.rel (%p307) target = $region12
      $region11: #{cv_multihead_attention.1} parent=5 // pred_region
        %s311 = ssub.s32 %s23, 1
        // Predicated region
        $region13: #{cv_multihead_attention.1} parent=11 // pred_check
          %p312 = pneg %p136
        $region14: #{cv_multihead_attention.1} parent=11 // pred_check_branch
          %314 = sbr.rel (%p312) target = $region16
        $region15: #{cv_multihead_attention.1} parent=11 // pred_region
          _
        $region16: #{cv_multihead_attention.1} parent=11 // pred_fallthru
          _
        // Predicated region
        $region17: #{cv_multihead_attention.1} parent=11 // pred_check
          %p315 = pneg %p157
        $region18: #{cv_multihead_attention.1} parent=11 // pred_check_branch
          %317 = sbr.rel (%p315) target = $region20
        $region19: #{cv_multihead_attention.1} parent=11 // pred_region
          _
        $region20: #{cv_multihead_attention.1} parent=11 // pred_fallthru
          _
        // Predicated region
        $region21: #{cv_multihead_attention.1} parent=11 // pred_check
          %p318 = pneg %p178
        $region22: #{cv_multihead_attention.1} parent=11 // pred_check_branch
          %320 = sbr.rel (%p318) target = $region24
        $region23: #{cv_multihead_attention.1} parent=11 // pred_region
          _
        $region24: #{cv_multihead_attention.1} parent=11 // pred_fallthru
          _
        // Predicated region
        $region25: #{cv_multihead_attention.1} parent=11 // pred_check
          %p321 = pneg %p199
        $region26: #{cv_multihead_attention.1} parent=11 // pred_check_branch
          %323 = sbr.rel (%p321) target = $region28
        $region27: #{cv_multihead_attention.1} parent=11 // pred_region
          _
        $region28: #{cv_multihead_attention.1} parent=11 // pred_fallthru
          _
        // Predicated region
        $region29: #{cv_multihead_attention.1} parent=11 // pred_check
          %p324 = pneg %p220
        $region30: #{cv_multihead_attention.1} parent=11 // pred_check_branch
          %326 = sbr.rel (%p324) target = $region32
        $region31: #{cv_multihead_attention.1} parent=11 // pred_region
          _
        $region32: #{cv_multihead_attention.1} parent=11 // pred_fallthru
          _
        // Predicated region
        $region33: #{cv_multihead_attention.1} parent=11 // pred_check
          %p327 = pneg %p241
        $region34: #{cv_multihead_attention.1} parent=11 // pred_check_branch
          %329 = sbr.rel (%p327) target = $region36
        $region35: #{cv_multihead_attention.1} parent=11 // pred_region
          _
        $region36: #{cv_multihead_attention.1} parent=11 // pred_fallthru
          _
      $region12: #{cv_multihead_attention.1} parent=5 // pred_fallthru
        _
      %p330 = scmp.lt.s32.totalorder %s23, 2
      // Predicated region
      $region37: #{cv_multihead_attention.1} parent=5 // pred_check
        %p331 = pneg %p330
      $region38: #{cv_multihead_attention.1} parent=5 // pred_check_branch
        %333 = sbr.rel (%p331) target = $region40
      $region39: #{cv_multihead_attention.1} parent=5 // pred_region
        // Predicated region
        $region41: #{cv_multihead_attention.1} parent=39 // pred_check
          %p334 = pneg %p57
        $region42: #{cv_multihead_attention.1} parent=39 // pred_check_branch
          %336 = sbr.rel (%p334) target = $region44
        $region43: #{cv_multihead_attention.1} parent=39 // pred_region
          %p337 = scmp.lt.s32.totalorder %s30, 1
          %s338 = scalar_select %p337, %s30, 1
          %p339 = scmp.lt.s32.totalorder %s31, 0
          %s340 = scalar_select %p339, %s31, 0
          %s341 = smul.addr %s340, 2
          %s342 = smul.addr %s338, 2
          %s343 = sadd.s32 %s341, %s342
          %s344 = smul.addr %s343, 8
          %s345 = scalar_lea.vmem %s0, %s344
        $region44: #{cv_multihead_attention.1} parent=39 // pred_fallthru
          _
        // Predicated region
        $region45: #{cv_multihead_attention.1} parent=39 // pred_check
          %p346 = pneg %p83
        $region46: #{cv_multihead_attention.1} parent=39 // pred_check_branch
          %348 = sbr.rel (%p346) target = $region48
        $region47: #{cv_multihead_attention.1} parent=39 // pred_region
          %p349 = scmp.lt.s32.totalorder %s30, 1
          %s350 = scalar_select %p349, %s30, 1
          %s351 = smul.addr %s350, 2
          %s352 = smul.addr %s351, 8
          %s353 = scalar_lea.vmem %s1, %s352
        $region48: #{cv_multihead_attention.1} parent=39 // pred_fallthru
          _
        // Predicated region
        $region49: #{cv_multihead_attention.1} parent=39 // pred_check
          %p354 = pneg %p109
        $region50: #{cv_multihead_attention.1} parent=39 // pred_check_branch
          %356 = sbr.rel (%p354) target = $region52
        $region51: #{cv_multihead_attention.1} parent=39 // pred_region
          %p357 = scmp.lt.s32.totalorder %s30, 1
          %s358 = scalar_select %p357, %s30, 1
          %s359 = smul.addr %s358, 2
          %s360 = smul.addr %s359, 8
          %s361 = scalar_lea.vmem %s2, %s360
        $region52: #{cv_multihead_attention.1} parent=39 // pred_fallthru
          _
      $region40: #{cv_multihead_attention.1} parent=5 // pred_fallthru
        _
      %p362 = scmp.le.s32.totalorder 1, %s23
      %p363 = scmp.lt.s32.totalorder %s23, 3
      %p364 = pnand %p362, %p363
      %p365 = pneg %p364
      // Predicated region
      $region53: #{cv_multihead_attention.1} parent=5 // pred_check
        _
      $region54: #{cv_multihead_attention.1} parent=5 // pred_check_branch
        %367 = sbr.rel (%p364) target = $region56
      $region55: #{cv_multihead_attention.1} parent=5 // pred_region
        %s368 = ssub.s32 %s23, 1
        %p369 = scmp.lt.s32.totalorder %s32, 1
        %s370 = scalar_select %p369, %s32, 1
        %p371 = scmp.lt.s32.totalorder %s33, 0
        %s372 = scalar_select %p371, %s33, 0
        %s373 = smul.addr %s372, 2
        %s374 = smul.addr %s370, 2
        %s375 = sadd.s32 %s373, %s374
        %s376 = smul.addr %s375, 8
        %s377 = scalar_lea.vmem %s0, %s376
        %p378 = pneg %p63
        %p379 = pneg %p60
        %p380 = scmp.lt.s32.totalorder %s32, 1
        %s381 = scalar_select %p380, %s32, 1
        %s382 = smul.addr %s381, 2
        %s383 = smul.addr %s382, 8
        %s384 = scalar_lea.vmem %s1, %s383
        %p385 = pneg %p89
        %p386 = pneg %p86
        %p387 = scmp.lt.s32.totalorder %s32, 1
        %s388 = scalar_select %p387, %s32, 1
        %s389 = smul.addr %s388, 2
        %s390 = smul.addr %s389, 8
        %s391 = scalar_lea.vmem %s2, %s390
        %p392 = pneg %p115
        %p393 = pneg %p112
        %p394 = pneg %p136
        %p395 = pneg %p133
        %p396 = pneg %p157
        %p397 = pneg %p154
        %p398 = pneg %p178
        %p399 = pneg %p175
        %p400 = pneg %p199
        %p401 = pneg %p196
        %p402 = pneg %p220
        %p403 = pneg %p217
        %p404 = pneg %p241
        %p405 = pneg %p238
        %p406 = pneg %p269
        %p407 = pneg %p266
        %s408 = sand.u32 %s256, 1
        %s409 = scalar_lea.sflag [#allocation5], %s408
        %s410 = sand.u32 %s256, 1
        %s411 = smul.addr %s410, 8
        %s412 = scalar_lea.vmem [#allocation4], %s411
        %p413 = pneg %p297
        %p414 = pneg %p294
        %s415 = sand.u32 %s284, 1
        %s416 = scalar_lea.sflag [#allocation7], %s415
        %s417 = sand.u32 %s284, 1
        %s418 = smul.addr %s417, 8
        %s419 = scalar_lea.vmem [#allocation6], %s418
        %p420 = scmp.lt.s32.totalorder %s32, 1
        %s421 = scalar_select %p420, %s32, 1
        %p422 = scmp.lt.s32.totalorder %s33, 0
        %s423 = scalar_select %p422, %s33, 0
        %s424 = smul.addr %s423, 2
        %s425 = smul.addr %s421, 2
        %s426 = sadd.s32 %s424, %s425
        %s427 = smul.addr %s426, 8
        %s428 = scalar_lea.vmem %s0, %s427
        %p429 = scmp.lt.s32.totalorder %s32, 1
        %s430 = scalar_select %p429, %s32, 1
        %s431 = smul.addr %s430, 2
        %s432 = smul.addr %s431, 8
        %s433 = scalar_lea.vmem %s1, %s432
        %p434 = scmp.lt.s32.totalorder %s32, 1
        %s435 = scalar_select %p434, %s32, 1
        %s436 = smul.addr %s435, 2
        %s437 = smul.addr %s436, 8
        %s438 = scalar_lea.vmem %s2, %s437
        %p439 = scmp.eq.s32.totalorder %s33, 0
        // Predicated region
        $region57: #{cv_multihead_attention.1} parent=55 // pred_check
          %p440 = pneg %p439
        $region58: #{cv_multihead_attention.1} parent=55 // pred_check_branch
          %442 = sbr.rel (%p440) target = $region60
        $region59: #{cv_multihead_attention.1} parent=55 // pred_region
          %v443 = vld [vmem:[%s433] sm:$0xff]
          %v444 = vld [vmem:[%s433 + $0x8] sm:$0xff]
          %v445 = vld [vmem:[%s438] sm:$0xff]
          %v446 = vld [vmem:[%s438 + $0x8] sm:$0xff]
          %v447 = vld [vmem:[%s4] sm:$0xff]
          %v448 = vld [vmem:[%s4 + $0x8] sm:$0xff]
          %v449 = vld [vmem:[%s4 + $0x10] sm:$0xff]
          %v450 = vld [vmem:[%s4 + $0x18] sm:$0xff]
          %v451 = vld [vmem:[%s4 + $0x20] sm:$0xff]
          %v452 = vld [vmem:[%s4 + $0x28] sm:$0xff]
          %v453 = vld [vmem:[%s4 + $0x30] sm:$0xff]
          %v454 = vld [vmem:[%s4 + $0x38] sm:$0xff]
          %v455 = vld [vmem:[%s4 + $0x40] sm:$0xff]
          %v456 = vld [vmem:[%s4 + $0x48] sm:$0xff]
          %v457 = vld [vmem:[%s4 + $0x50] sm:$0xff]
          %v458 = vld [vmem:[%s4 + $0x58] sm:$0xff]
          %v459 = vld [vmem:[%s4 + $0x60] sm:$0xff]
          %v460 = vld [vmem:[%s4 + $0x68] sm:$0xff]
          %v461 = vld [vmem:[%s4 + $0x70] sm:$0xff]
          %v462 = vld [vmem:[%s4 + $0x78] sm:$0xff]
          %v463 = vld [vmem:[%s4 + $0x80] sm:$0xff]
          %v464 = vld [vmem:[%s4 + $0x88] sm:$0xff]
          %v465 = vld [vmem:[%s4 + $0x90] sm:$0xff]
          %v466 = vld [vmem:[%s4 + $0x98] sm:$0xff]
          %v467 = vld [vmem:[%s4 + $0xa0] sm:$0xff]
          %v468 = vld [vmem:[%s4 + $0xa8] sm:$0xff]
          %v469 = vld [vmem:[%s4 + $0xb0] sm:$0xff]
          %v470 = vld [vmem:[%s4 + $0xb8] sm:$0xff]
          %v471 = vld [vmem:[%s4 + $0xc0] sm:$0xff]
          %v472 = vld [vmem:[%s4 + $0xc8] sm:$0xff]
          %v473 = vld [vmem:[%s4 + $0xd0] sm:$0xff]
          %v474 = vld [vmem:[%s4 + $0xd8] sm:$0xff]
          %v475 = vld [vmem:[%s4 + $0xe0] sm:$0xff]
          %v476 = vld [vmem:[%s4 + $0xe8] sm:$0xff]
          %v477 = vld [vmem:[%s4 + $0xf0] sm:$0xff]
          %v478 = vld [vmem:[%s4 + $0xf8] sm:$0xff]
          %479 = vmatpush.msra.mxu0 %v462
          %480 = vmatpush.msra.mxu0 %v461
          %481 = vmatpush.msra.mxu0 %v460
          %482 = vmatpush.msra.mxu0 %v459
          %483 = vmatpush.msra.mxu0 %v458
          %484 = vmatpush.msra.mxu0 %v457
          %485 = vmatpush.msra.mxu0 %v456
          %486 = vmatpush.msra.mxu0 %v455
          %487 = vmatpush.msra.mxu0 %v454
          %488 = vmatpush.msra.mxu0 %v453
          %489 = vmatpush.msra.mxu0 %v452
          %490 = vmatpush.msra.mxu0 %v451
          %491 = vmatpush.msra.mxu0 %v450
          %492 = vmatpush.msra.mxu0 %v449
          %493 = vmatpush.msra.mxu0 %v448
          %494 = vmatpush.msra.mxu0 %v447
          %495 = vmatmul.f32.gmra.mxu0 %v443
          %v496 = vpop.f32.mrf.mxu0
          %v497 = vadd.f32 0.0, %v496
          %498 = vdwg.mxu0
          %499 = vmatpush.msra.mxu0 %v478
          %500 = vmatpush.msra.mxu0 %v477
          %501 = vmatpush.msra.mxu0 %v476
          %502 = vmatpush.msra.mxu0 %v475
          %503 = vmatpush.msra.mxu0 %v474
          %504 = vmatpush.msra.mxu0 %v473
          %505 = vmatpush.msra.mxu0 %v472
          %506 = vmatpush.msra.mxu0 %v471
          %507 = vmatpush.msra.mxu0 %v470
          %508 = vmatpush.msra.mxu0 %v469
          %509 = vmatpush.msra.mxu0 %v468
          %510 = vmatpush.msra.mxu0 %v467
          %511 = vmatpush.msra.mxu0 %v466
          %512 = vmatpush.msra.mxu0 %v465
          %513 = vmatpush.msra.mxu0 %v464
          %514 = vmatpush.msra.mxu0 %v463
          %515 = vmatmul.f32.gmra.mxu0 %v444
          %v516 = vpop.f32.mrf.mxu0
          %v517 = vadd.f32 %v497, %v516
          %518 = vdwg.mxu0
          %vm519 = vcmask 523264
          %520 = vst.msk [vmem:[#allocation2] sm:$0xff] %vm519, %v517
          %v521 = vld [vmem:[%s5] sm:$0xff]
          %v522 = vld [vmem:[%s5 + $0x8] sm:$0xff]
          %v523 = vld [vmem:[%s5 + $0x10] sm:$0xff]
          %v524 = vld [vmem:[%s5 + $0x18] sm:$0xff]
          %v525 = vld [vmem:[%s5 + $0x20] sm:$0xff]
          %v526 = vld [vmem:[%s5 + $0x28] sm:$0xff]
          %v527 = vld [vmem:[%s5 + $0x30] sm:$0xff]
          %v528 = vld [vmem:[%s5 + $0x38] sm:$0xff]
          %v529 = vld [vmem:[%s5 + $0x40] sm:$0xff]
          %v530 = vld [vmem:[%s5 + $0x48] sm:$0xff]
          %v531 = vld [vmem:[%s5 + $0x50] sm:$0xff]
          %v532 = vld [vmem:[%s5 + $0x58] sm:$0xff]
          %v533 = vld [vmem:[%s5 + $0x60] sm:$0xff]
          %v534 = vld [vmem:[%s5 + $0x68] sm:$0xff]
          %v535 = vld [vmem:[%s5 + $0x70] sm:$0xff]
          %v536 = vld [vmem:[%s5 + $0x78] sm:$0xff]
          %v537 = vld [vmem:[%s5 + $0x80] sm:$0xff]
          %v538 = vld [vmem:[%s5 + $0x88] sm:$0xff]
          %v539 = vld [vmem:[%s5 + $0x90] sm:$0xff]
          %v540 = vld [vmem:[%s5 + $0x98] sm:$0xff]
          %v541 = vld [vmem:[%s5 + $0xa0] sm:$0xff]
          %v542 = vld [vmem:[%s5 + $0xa8] sm:$0xff]
          %v543 = vld [vmem:[%s5 + $0xb0] sm:$0xff]
          %v544 = vld [vmem:[%s5 + $0xb8] sm:$0xff]
          %v545 = vld [vmem:[%s5 + $0xc0] sm:$0xff]
          %v546 = vld [vmem:[%s5 + $0xc8] sm:$0xff]
          %v547 = vld [vmem:[%s5 + $0xd0] sm:$0xff]
          %v548 = vld [vmem:[%s5 + $0xd8] sm:$0xff]
          %v549 = vld [vmem:[%s5 + $0xe0] sm:$0xff]
          %v550 = vld [vmem:[%s5 + $0xe8] sm:$0xff]
          %v551 = vld [vmem:[%s5 + $0xf0] sm:$0xff]
          %v552 = vld [vmem:[%s5 + $0xf8] sm:$0xff]
          %553 = vmatpush.msra.mxu0 %v536
          %554 = vmatpush.msra.mxu0 %v535
          %555 = vmatpush.msra.mxu0 %v534
          %556 = vmatpush.msra.mxu0 %v533
          %557 = vmatpush.msra.mxu0 %v532
          %558 = vmatpush.msra.mxu0 %v531
          %559 = vmatpush.msra.mxu0 %v530
          %560 = vmatpush.msra.mxu0 %v529
          %561 = vmatpush.msra.mxu0 %v528
          %562 = vmatpush.msra.mxu0 %v527
          %563 = vmatpush.msra.mxu0 %v526
          %564 = vmatpush.msra.mxu0 %v525
          %565 = vmatpush.msra.mxu0 %v524
          %566 = vmatpush.msra.mxu0 %v523
          %567 = vmatpush.msra.mxu0 %v522
          %568 = vmatpush.msra.mxu0 %v521
          %569 = vmatmul.f32.gmra.mxu0 %v445
          %v570 = vpop.f32.mrf.mxu0
          %v571 = vadd.f32 0.0, %v570
          %572 = vdwg.mxu0
          %573 = vmatpush.msra.mxu0 %v552
          %574 = vmatpush.msra.mxu0 %v551
          %575 = vmatpush.msra.mxu0 %v550
          %576 = vmatpush.msra.mxu0 %v549
          %577 = vmatpush.msra.mxu0 %v548
          %578 = vmatpush.msra.mxu0 %v547
          %579 = vmatpush.msra.mxu0 %v546
          %580 = vmatpush.msra.mxu0 %v545
          %581 = vmatpush.msra.mxu0 %v544
          %582 = vmatpush.msra.mxu0 %v543
          %583 = vmatpush.msra.mxu0 %v542
          %584 = vmatpush.msra.mxu0 %v541
          %585 = vmatpush.msra.mxu0 %v540
          %586 = vmatpush.msra.mxu0 %v539
          %587 = vmatpush.msra.mxu0 %v538
          %588 = vmatpush.msra.mxu0 %v537
          %589 = vmatmul.f32.gmra.mxu0 %v446
          %v590 = vpop.f32.mrf.mxu0
          %v591 = vadd.f32 %v571, %v590
          %592 = vdwg.mxu0
          %593 = vst.msk [vmem:[#allocation3] sm:$0xff] %vm519, %v591
        $region60: #{cv_multihead_attention.1} parent=55 // pred_fallthru
          _
        %v594 = vld [vmem:[%s428] sm:$0xff]
        %v595 = vld [vmem:[%s428 + $0x8] sm:$0xff]
        %v596 = vld [vmem:[%s3] sm:$0xff]
        %v597 = vld [vmem:[%s3 + $0x8] sm:$0xff]
        %v598 = vld [vmem:[%s3 + $0x10] sm:$0xff]
        %v599 = vld [vmem:[%s3 + $0x18] sm:$0xff]
        %v600 = vld [vmem:[%s3 + $0x20] sm:$0xff]
        %v601 = vld [vmem:[%s3 + $0x28] sm:$0xff]
        %v602 = vld [vmem:[%s3 + $0x30] sm:$0xff]
        %v603 = vld [vmem:[%s3 + $0x38] sm:$0xff]
        %v604 = vld [vmem:[%s3 + $0x40] sm:$0xff]
        %v605 = vld [vmem:[%s3 + $0x48] sm:$0xff]
        %v606 = vld [vmem:[%s3 + $0x50] sm:$0xff]
        %v607 = vld [vmem:[%s3 + $0x58] sm:$0xff]
        %v608 = vld [vmem:[%s3 + $0x60] sm:$0xff]
        %v609 = vld [vmem:[%s3 + $0x68] sm:$0xff]
        %v610 = vld [vmem:[%s3 + $0x70] sm:$0xff]
        %v611 = vld [vmem:[%s3 + $0x78] sm:$0xff]
        %v612 = vld [vmem:[%s3 + $0x80] sm:$0xff]
        %v613 = vld [vmem:[%s3 + $0x88] sm:$0xff]
        %v614 = vld [vmem:[%s3 + $0x90] sm:$0xff]
        %v615 = vld [vmem:[%s3 + $0x98] sm:$0xff]
        %v616 = vld [vmem:[%s3 + $0xa0] sm:$0xff]
        %v617 = vld [vmem:[%s3 + $0xa8] sm:$0xff]
        %v618 = vld [vmem:[%s3 + $0xb0] sm:$0xff]
        %v619 = vld [vmem:[%s3 + $0xb8] sm:$0xff]
        %v620 = vld [vmem:[%s3 + $0xc0] sm:$0xff]
        %v621 = vld [vmem:[%s3 + $0xc8] sm:$0xff]
        %v622 = vld [vmem:[%s3 + $0xd0] sm:$0xff]
        %v623 = vld [vmem:[%s3 + $0xd8] sm:$0xff]
        %v624 = vld [vmem:[%s3 + $0xe0] sm:$0xff]
        %v625 = vld [vmem:[%s3 + $0xe8] sm:$0xff]
        %v626 = vld [vmem:[%s3 + $0xf0] sm:$0xff]
        %v627 = vld [vmem:[%s3 + $0xf8] sm:$0xff]
        %628 = vmatpush.msra.mxu0 %v611
        %629 = vmatpush.msra.mxu0 %v610
        %630 = vmatpush.msra.mxu0 %v609
        %631 = vmatpush.msra.mxu0 %v608
        %632 = vmatpush.msra.mxu0 %v607
        %633 = vmatpush.msra.mxu0 %v606
        %634 = vmatpush.msra.mxu0 %v605
        %635 = vmatpush.msra.mxu0 %v604
        %636 = vmatpush.msra.mxu0 %v603
        %637 = vmatpush.msra.mxu0 %v602
        %638 = vmatpush.msra.mxu0 %v601
        %639 = vmatpush.msra.mxu0 %v600
        %640 = vmatpush.msra.mxu0 %v599
        %641 = vmatpush.msra.mxu0 %v598
        %642 = vmatpush.msra.mxu0 %v597
        %643 = vmatpush.msra.mxu0 %v596
        %644 = vmatmul.f32.gmra.mxu0 %v594
        %v645 = vpop.f32.mrf.mxu0
        %v646 = vadd.f32 0.0, %v645
        %647 = vdwg.mxu0
        %648 = vmatpush.msra.mxu0 %v627
        %649 = vmatpush.msra.mxu0 %v626
        %650 = vmatpush.msra.mxu0 %v625
        %651 = vmatpush.msra.mxu0 %v624
        %652 = vmatpush.msra.mxu0 %v623
        %653 = vmatpush.msra.mxu0 %v622
        %654 = vmatpush.msra.mxu0 %v621
        %655 = vmatpush.msra.mxu0 %v620
        %656 = vmatpush.msra.mxu0 %v619
        %657 = vmatpush.msra.mxu0 %v618
        %658 = vmatpush.msra.mxu0 %v617
        %659 = vmatpush.msra.mxu0 %v616
        %660 = vmatpush.msra.mxu0 %v615
        %661 = vmatpush.msra.mxu0 %v614
        %662 = vmatpush.msra.mxu0 %v613
        %663 = vmatpush.msra.mxu0 %v612
        %664 = vmatmul.f32.gmra.mxu0 %v595
        %v665 = vpop.f32.mrf.mxu0
        %v666 = vadd.f32 %v646, %v665
        %667 = vdwg.mxu0
        %v668 = vld [vmem:[#allocation2] sm:$0xff]
        %v669 = vld [vmem:[#allocation3] sm:$0xff]
        %v670 = vsub.f32 0.0, %v668
        %vm671 = vcmask 64512
        %v672 = vsel %vm671, %v668, %v670
        %674 = vrot.lane.b32.xlu0 %v668, 120
        %v675 = vpop.permute.xlu0 %674
        %677 = vrot.lane.b32.xlu0 %v668, 8
        %v678 = vpop.permute.xlu0 %677
        %v680 = vsel %vm671, %v675, %v678
        %vm681 = vcmask 130048
        %v683 = vsel %vm681, %v666, 0
        %v686 = vsel %vm681, %v672, 0
        %688 = vmatpush.xpose.msra.mxu0 0.0
        %689 = vmatpush.xpose.msra.mxu0 0.0
        %690 = vmatpush.xpose.msra.mxu0 0.0
        %691 = vmatpush.xpose.msra.mxu0 0.0
        %692 = vmatpush.xpose.msra.mxu0 0.0
        %693 = vmatpush.xpose.msra.mxu0 0.0
        %694 = vmatpush.xpose.msra.mxu0 0.0
        %695 = vmatpush.xpose.msra.mxu0 0.0
        %696 = vmatpush.xpose.msra.mxu0 0.0
        %697 = vmatpush.xpose.msra.mxu0 0.0
        %698 = vmatpush.xpose.msra.mxu0 0.0
        %699 = vmatpush.xpose.msra.mxu0 0.0
        %700 = vmatpush.xpose.msra.mxu0 0.0
        %701 = vmatpush.xpose.msra.mxu0 0.0
        %702 = vmatpush.xpose.msra.mxu0 0.0
        %703 = vmatpush.xpose.msra.mxu0 %v686
        %704 = vmatmul.f32.gmra.mxu0 %v683
        %v705 = vpop.f32.mrf.mxu0
        %v706 = vadd.f32 0.0, %v705
        %707 = vdwg.mxu0
        %v709 = vsel %vm681, %v680, 0
        %711 = vmatpush.xpose.msra.mxu0 0.0
        %712 = vmatpush.xpose.msra.mxu0 0.0
        %713 = vmatpush.xpose.msra.mxu0 0.0
        %714 = vmatpush.xpose.msra.mxu0 0.0
        %715 = vmatpush.xpose.msra.mxu0 0.0
        %716 = vmatpush.xpose.msra.mxu0 0.0
        %717 = vmatpush.xpose.msra.mxu0 0.0
        %718 = vmatpush.xpose.msra.mxu0 0.0
        %719 = vmatpush.xpose.msra.mxu0 0.0
        %720 = vmatpush.xpose.msra.mxu0 0.0
        %721 = vmatpush.xpose.msra.mxu0 0.0
        %722 = vmatpush.xpose.msra.mxu0 0.0
        %723 = vmatpush.xpose.msra.mxu0 0.0
        %724 = vmatpush.xpose.msra.mxu0 0.0
        %725 = vmatpush.xpose.msra.mxu0 0.0
        %726 = vmatpush.xpose.msra.mxu0 %v709
        %727 = vmatmul.f32.gmra.mxu0 %v683
        %v728 = vpop.f32.mrf.mxu0
        %v729 = vadd.f32 0.0, %v728
        %730 = vdwg.mxu0
        %v731 = vmul.f32 %v706, %v706
        %v732 = vmul.f32 %v729, %v729
        %v733 = vadd.f32 %v731, %v732
        %v734 = vmax.f32 %v733, 1e-30
        %v735 = vrsqrt.pop %v734
        %v736 = vmul.f32 %v735, %v734
        %v737 = vmul.f32 %v736, %v735
        %v738 = vmul.f32 0.5, %v737
        %v739 = vsub.f32 1.5, %v738
        %v740 = vmul.f32 %v735, %v739
        %vm741 = vweird.f32 %v734
        %vm742 = vweird.f32 %v735
        %vm743 = vmor %vm741, %vm742
        %v744 = vsel %vm743, %v735, %v740
        %v745 = vmul.f32 %v733, %v744
        %v746 = vsel %vm671, %v745, -inf
        %747 = vmax.xlane.f32.xlu0 %v746
        %v748 = vpop.xlane.xlu0 %747
        %v749 = vsub.f32 %v745, %v748
        %v750 = vmul.f32 %v749, 1.442695
        %v751 = vpow.pop %v750
        %v752 = vsel %vm671, %v751, 0.0
        %753 = vadd.xlane.f32.xlu0 %v752
        %v754 = vpop.xlane.xlu0 %753
        %v755 = vrcp.pop %v754
        %v756 = vmul.f32 %v751, %v755
        %v757 = vmul.f32 %v756, %v744
        %v758 = vmul.f32 %v706, %v757
        %v759 = vmul.f32 %v729, %v757
        %v761 = vsel %vm671, %v758, 0
        %763 = vmatpush.msra.mxu0 0.0
        %764 = vmatpush.msra.mxu0 0.0
        %765 = vmatpush.msra.mxu0 0.0
        %766 = vmatpush.msra.mxu0 0.0
        %767 = vmatpush.msra.mxu0 0.0
        %768 = vmatpush.msra.mxu0 0.0
        %769 = vmatpush.msra.mxu0 0.0
        %770 = vmatpush.msra.mxu0 0.0
        %771 = vmatpush.msra.mxu0 0.0
        %772 = vmatpush.msra.mxu0 0.0
        %773 = vmatpush.msra.mxu0 0.0
        %774 = vmatpush.msra.mxu0 0.0
        %775 = vmatpush.msra.mxu0 0.0
        %776 = vmatpush.msra.mxu0 0.0
        %777 = vmatpush.msra.mxu0 0.0
        %778 = vmatpush.msra.mxu0 %v669
        %779 = vmatmul.f32.gmra.mxu0 %v761
        %v780 = vpop.f32.mrf.mxu0
        %v781 = vadd.f32 0.0, %v780
        %782 = vdwg.mxu0
        %784 = vrot.lane.b32.xlu0 %v669, 120
        %v785 = vpop.permute.xlu0 %784
        %v788 = vsel %vm671, %v759, 0
        %790 = vmatpush.msra.mxu0 0.0
        %791 = vmatpush.msra.mxu0 0.0
        %792 = vmatpush.msra.mxu0 0.0
        %793 = vmatpush.msra.mxu0 0.0
        %794 = vmatpush.msra.mxu0 0.0
        %795 = vmatpush.msra.mxu0 0.0
        %796 = vmatpush.msra.mxu0 0.0
        %797 = vmatpush.msra.mxu0 0.0
        %798 = vmatpush.msra.mxu0 0.0
        %799 = vmatpush.msra.mxu0 0.0
        %800 = vmatpush.msra.mxu0 0.0
        %801 = vmatpush.msra.mxu0 0.0
        %802 = vmatpush.msra.mxu0 0.0
        %803 = vmatpush.msra.mxu0 0.0
        %804 = vmatpush.msra.mxu0 0.0
        %805 = vmatpush.msra.mxu0 %v785
        %806 = vmatmul.f32.gmra.mxu0 %v788
        %v807 = vpop.f32.mrf.mxu0
        %v808 = vadd.f32 0.0, %v807
        %809 = vdwg.mxu0
        %v810 = vsub.f32 %v781, %v808
        %811 = vmatpush.msra.mxu0 0.0
        %812 = vmatpush.msra.mxu0 0.0
        %813 = vmatpush.msra.mxu0 0.0
        %814 = vmatpush.msra.mxu0 0.0
        %815 = vmatpush.msra.mxu0 0.0
        %816 = vmatpush.msra.mxu0 0.0
        %817 = vmatpush.msra.mxu0 0.0
        %818 = vmatpush.msra.mxu0 0.0
        %819 = vmatpush.msra.mxu0 0.0
        %820 = vmatpush.msra.mxu0 0.0
        %821 = vmatpush.msra.mxu0 0.0
        %822 = vmatpush.msra.mxu0 0.0
        %823 = vmatpush.msra.mxu0 0.0
        %824 = vmatpush.msra.mxu0 0.0
        %825 = vmatpush.msra.mxu0 0.0
        %826 = vmatpush.msra.mxu0 %v669
        %827 = vmatmul.f32.gmra.mxu0 %v788
        %v828 = vpop.f32.mrf.mxu0
        %v829 = vadd.f32 0.0, %v828
        %830 = vdwg.mxu0
        %831 = vmatpush.msra.mxu0 0.0
        %832 = vmatpush.msra.mxu0 0.0
        %833 = vmatpush.msra.mxu0 0.0
        %834 = vmatpush.msra.mxu0 0.0
        %835 = vmatpush.msra.mxu0 0.0
        %836 = vmatpush.msra.mxu0 0.0
        %837 = vmatpush.msra.mxu0 0.0
        %838 = vmatpush.msra.mxu0 0.0
        %839 = vmatpush.msra.mxu0 0.0
        %840 = vmatpush.msra.mxu0 0.0
        %841 = vmatpush.msra.mxu0 0.0
        %842 = vmatpush.msra.mxu0 0.0
        %843 = vmatpush.msra.mxu0 0.0
        %844 = vmatpush.msra.mxu0 0.0
        %845 = vmatpush.msra.mxu0 0.0
        %846 = vmatpush.msra.mxu0 %v785
        %847 = vmatmul.f32.gmra.mxu0 %v761
        %v848 = vpop.f32.mrf.mxu0
        %v849 = vadd.f32 %v829, %v848
        %850 = vdwg.mxu0
        %851 = vrot.lane.b32.xlu0 %v668, 112
        %v852 = vpop.permute.xlu0 %851
        %855 = vrot.lane.b32.xlu0 %v670, 112
        %v856 = vpop.permute.xlu0 %855
        %v858 = vsel %vm671, %v852, %v856
        %859 = vrot.lane.b32.xlu0 %v668, 104
        %v860 = vpop.permute.xlu0 %859
        %v862 = vsel %vm671, %v860, %v675
        %863 = vrot.lane.b32.xlu0 %v666, 112
        %v864 = vpop.permute.xlu0 %863
        %v865 = vsel %vm681, %v864, 0
        %v868 = vsel %vm681, %v858, 0
        %870 = vmatpush.xpose.msra.mxu0 0.0
        %871 = vmatpush.xpose.msra.mxu0 0.0
        %872 = vmatpush.xpose.msra.mxu0 0.0
        %873 = vmatpush.xpose.msra.mxu0 0.0
        %874 = vmatpush.xpose.msra.mxu0 0.0
        %875 = vmatpush.xpose.msra.mxu0 0.0
        %876 = vmatpush.xpose.msra.mxu0 0.0
        %877 = vmatpush.xpose.msra.mxu0 0.0
        %878 = vmatpush.xpose.msra.mxu0 0.0
        %879 = vmatpush.xpose.msra.mxu0 0.0
        %880 = vmatpush.xpose.msra.mxu0 0.0
        %881 = vmatpush.xpose.msra.mxu0 0.0
        %882 = vmatpush.xpose.msra.mxu0 0.0
        %883 = vmatpush.xpose.msra.mxu0 0.0
        %884 = vmatpush.xpose.msra.mxu0 0.0
        %885 = vmatpush.xpose.msra.mxu0 %v868
        %886 = vmatmul.f32.gmra.mxu0 %v865
        %v887 = vpop.f32.mrf.mxu0
        %v888 = vadd.f32 0.0, %v887
        %889 = vdwg.mxu0
        %v891 = vsel %vm681, %v862, 0
        %893 = vmatpush.xpose.msra.mxu0 0.0
        %894 = vmatpush.xpose.msra.mxu0 0.0
        %895 = vmatpush.xpose.msra.mxu0 0.0
        %896 = vmatpush.xpose.msra.mxu0 0.0
        %897 = vmatpush.xpose.msra.mxu0 0.0
        %898 = vmatpush.xpose.msra.mxu0 0.0
        %899 = vmatpush.xpose.msra.mxu0 0.0
        %900 = vmatpush.xpose.msra.mxu0 0.0
        %901 = vmatpush.xpose.msra.mxu0 0.0
        %902 = vmatpush.xpose.msra.mxu0 0.0
        %903 = vmatpush.xpose.msra.mxu0 0.0
        %904 = vmatpush.xpose.msra.mxu0 0.0
        %905 = vmatpush.xpose.msra.mxu0 0.0
        %906 = vmatpush.xpose.msra.mxu0 0.0
        %907 = vmatpush.xpose.msra.mxu0 0.0
        %908 = vmatpush.xpose.msra.mxu0 %v891
        %909 = vmatmul.f32.gmra.mxu0 %v865
        %v910 = vpop.f32.mrf.mxu0
        %v911 = vadd.f32 0.0, %v910
        %912 = vdwg.mxu0
        %v913 = vmul.f32 %v888, %v888
        %v914 = vmul.f32 %v911, %v911
        %v915 = vadd.f32 %v913, %v914
        %v916 = vmax.f32 %v915, 1e-30
        %v917 = vrsqrt.pop %v916
        %v918 = vmul.f32 %v917, %v916
        %v919 = vmul.f32 %v918, %v917
        %v920 = vmul.f32 0.5, %v919
        %v921 = vsub.f32 1.5, %v920
        %v922 = vmul.f32 %v917, %v921
        %vm923 = vweird.f32 %v916
        %vm924 = vweird.f32 %v917
        %vm925 = vmor %vm923, %vm924
        %v926 = vsel %vm925, %v917, %v922
        %v927 = vmul.f32 %v915, %v926
        %v928 = vsel %vm671, %v927, -inf
        %929 = vmax.xlane.f32.xlu0 %v928
        %v930 = vpop.xlane.xlu0 %929
        %v931 = vsub.f32 %v927, %v930
        %v932 = vmul.f32 %v931, 1.442695
        %v933 = vpow.pop %v932
        %v934 = vsel %vm671, %v933, 0.0
        %935 = vadd.xlane.f32.xlu0 %v934
        %v936 = vpop.xlane.xlu0 %935
        %v937 = vrcp.pop %v936
        %v938 = vmul.f32 %v933, %v937
        %v939 = vmul.f32 %v938, %v926
        %v940 = vmul.f32 %v888, %v939
        %v941 = vmul.f32 %v911, %v939
        %942 = vrot.lane.b32.xlu0 %v669, 112
        %v943 = vpop.permute.xlu0 %942
        %v946 = vsel %vm671, %v940, 0
        %948 = vmatpush.msra.mxu0 0.0
        %949 = vmatpush.msra.mxu0 0.0
        %950 = vmatpush.msra.mxu0 0.0
        %951 = vmatpush.msra.mxu0 0.0
        %952 = vmatpush.msra.mxu0 0.0
        %953 = vmatpush.msra.mxu0 0.0
        %954 = vmatpush.msra.mxu0 0.0
        %955 = vmatpush.msra.mxu0 0.0
        %956 = vmatpush.msra.mxu0 0.0
        %957 = vmatpush.msra.mxu0 0.0
        %958 = vmatpush.msra.mxu0 0.0
        %959 = vmatpush.msra.mxu0 0.0
        %960 = vmatpush.msra.mxu0 0.0
        %961 = vmatpush.msra.mxu0 0.0
        %962 = vmatpush.msra.mxu0 0.0
        %963 = vmatpush.msra.mxu0 %v943
        %964 = vmatmul.f32.gmra.mxu0 %v946
        %v965 = vpop.f32.mrf.mxu0
        %v966 = vadd.f32 0.0, %v965
        %967 = vdwg.mxu0
        %968 = vrot.lane.b32.xlu0 %v669, 104
        %v969 = vpop.permute.xlu0 %968
        %v972 = vsel %vm671, %v941, 0
        %974 = vmatpush.msra.mxu0 0.0
        %975 = vmatpush.msra.mxu0 0.0
        %976 = vmatpush.msra.mxu0 0.0
        %977 = vmatpush.msra.mxu0 0.0
        %978 = vmatpush.msra.mxu0 0.0
        %979 = vmatpush.msra.mxu0 0.0
        %980 = vmatpush.msra.mxu0 0.0
        %981 = vmatpush.msra.mxu0 0.0
        %982 = vmatpush.msra.mxu0 0.0
        %983 = vmatpush.msra.mxu0 0.0
        %984 = vmatpush.msra.mxu0 0.0
        %985 = vmatpush.msra.mxu0 0.0
        %986 = vmatpush.msra.mxu0 0.0
        %987 = vmatpush.msra.mxu0 0.0
        %988 = vmatpush.msra.mxu0 0.0
        %989 = vmatpush.msra.mxu0 %v969
        %990 = vmatmul.f32.gmra.mxu0 %v972
        %v991 = vpop.f32.mrf.mxu0
        %v992 = vadd.f32 0.0, %v991
        %993 = vdwg.mxu0
        %v994 = vsub.f32 %v966, %v992
        %995 = vmatpush.msra.mxu0 0.0
        %996 = vmatpush.msra.mxu0 0.0
        %997 = vmatpush.msra.mxu0 0.0
        %998 = vmatpush.msra.mxu0 0.0
        %999 = vmatpush.msra.mxu0 0.0
        %1000 = vmatpush.msra.mxu0 0.0
        %1001 = vmatpush.msra.mxu0 0.0
        %1002 = vmatpush.msra.mxu0 0.0
        %1003 = vmatpush.msra.mxu0 0.0
        %1004 = vmatpush.msra.mxu0 0.0
        %1005 = vmatpush.msra.mxu0 0.0
        %1006 = vmatpush.msra.mxu0 0.0
        %1007 = vmatpush.msra.mxu0 0.0
        %1008 = vmatpush.msra.mxu0 0.0
        %1009 = vmatpush.msra.mxu0 0.0
        %1010 = vmatpush.msra.mxu0 %v943
        %1011 = vmatmul.f32.gmra.mxu0 %v972
        %v1012 = vpop.f32.mrf.mxu0
        %v1013 = vadd.f32 0.0, %v1012
        %1014 = vdwg.mxu0
        %1015 = vmatpush.msra.mxu0 0.0
        %1016 = vmatpush.msra.mxu0 0.0
        %1017 = vmatpush.msra.mxu0 0.0
        %1018 = vmatpush.msra.mxu0 0.0
        %1019 = vmatpush.msra.mxu0 0.0
        %1020 = vmatpush.msra.mxu0 0.0
        %1021 = vmatpush.msra.mxu0 0.0
        %1022 = vmatpush.msra.mxu0 0.0
        %1023 = vmatpush.msra.mxu0 0.0
        %1024 = vmatpush.msra.mxu0 0.0
        %1025 = vmatpush.msra.mxu0 0.0
        %1026 = vmatpush.msra.mxu0 0.0
        %1027 = vmatpush.msra.mxu0 0.0
        %1028 = vmatpush.msra.mxu0 0.0
        %1029 = vmatpush.msra.mxu0 0.0
        %1030 = vmatpush.msra.mxu0 %v969
        %1031 = vmatmul.f32.gmra.mxu0 %v946
        %v1032 = vpop.f32.mrf.mxu0
        %v1033 = vadd.f32 %v1013, %v1032
        %1034 = vdwg.mxu0
        %1035 = vrot.lane.b32.xlu0 %v668, 96
        %v1036 = vpop.permute.xlu0 %1035
        %1038 = vrot.lane.b32.xlu0 %v670, 96
        %v1039 = vpop.permute.xlu0 %1038
        %v1041 = vsel %vm671, %v1036, %v1039
        %1042 = vrot.lane.b32.xlu0 %v668, 88
        %v1043 = vpop.permute.xlu0 %1042
        %v1045 = vsel %vm671, %v1043, %v860
        %1046 = vrot.lane.b32.xlu0 %v666, 96
        %v1047 = vpop.permute.xlu0 %1046
        %v1048 = vsel %vm681, %v1047, 0
        %v1051 = vsel %vm681, %v1041, 0
        %1053 = vmatpush.xpose.msra.mxu0 0.0
        %1054 = vmatpush.xpose.msra.mxu0 0.0
        %1055 = vmatpush.xpose.msra.mxu0 0.0
        %1056 = vmatpush.xpose.msra.mxu0 0.0
        %1057 = vmatpush.xpose.msra.mxu0 0.0
        %1058 = vmatpush.xpose.msra.mxu0 0.0
        %1059 = vmatpush.xpose.msra.mxu0 0.0
        %1060 = vmatpush.xpose.msra.mxu0 0.0
        %1061 = vmatpush.xpose.msra.mxu0 0.0
        %1062 = vmatpush.xpose.msra.mxu0 0.0
        %1063 = vmatpush.xpose.msra.mxu0 0.0
        %1064 = vmatpush.xpose.msra.mxu0 0.0
        %1065 = vmatpush.xpose.msra.mxu0 0.0
        %1066 = vmatpush.xpose.msra.mxu0 0.0
        %1067 = vmatpush.xpose.msra.mxu0 0.0
        %1068 = vmatpush.xpose.msra.mxu0 %v1051
        %1069 = vmatmul.f32.gmra.mxu0 %v1048
        %v1070 = vpop.f32.mrf.mxu0
        %v1071 = vadd.f32 0.0, %v1070
        %1072 = vdwg.mxu0
        %v1074 = vsel %vm681, %v1045, 0
        %1076 = vmatpush.xpose.msra.mxu0 0.0
        %1077 = vmatpush.xpose.msra.mxu0 0.0
        %1078 = vmatpush.xpose.msra.mxu0 0.0
        %1079 = vmatpush.xpose.msra.mxu0 0.0
        %1080 = vmatpush.xpose.msra.mxu0 0.0
        %1081 = vmatpush.xpose.msra.mxu0 0.0
        %1082 = vmatpush.xpose.msra.mxu0 0.0
        %1083 = vmatpush.xpose.msra.mxu0 0.0
        %1084 = vmatpush.xpose.msra.mxu0 0.0
        %1085 = vmatpush.xpose.msra.mxu0 0.0
        %1086 = vmatpush.xpose.msra.mxu0 0.0
        %1087 = vmatpush.xpose.msra.mxu0 0.0
        %1088 = vmatpush.xpose.msra.mxu0 0.0
        %1089 = vmatpush.xpose.msra.mxu0 0.0
        %1090 = vmatpush.xpose.msra.mxu0 0.0
        %1091 = vmatpush.xpose.msra.mxu0 %v1074
        %1092 = vmatmul.f32.gmra.mxu0 %v1048
        %v1093 = vpop.f32.mrf.mxu0
        %v1094 = vadd.f32 0.0, %v1093
        %1095 = vdwg.mxu0
        %v1096 = vmul.f32 %v1071, %v1071
        %v1097 = vmul.f32 %v1094, %v1094
        %v1098 = vadd.f32 %v1096, %v1097
        %v1099 = vmax.f32 %v1098, 1e-30
        %v1100 = vrsqrt.pop %v1099
        %v1101 = vmul.f32 %v1100, %v1099
        %v1102 = vmul.f32 %v1101, %v1100
        %v1103 = vmul.f32 0.5, %v1102
        %v1104 = vsub.f32 1.5, %v1103
        %v1105 = vmul.f32 %v1100, %v1104
        %vm1106 = vweird.f32 %v1099
        %vm1107 = vweird.f32 %v1100
        %vm1108 = vmor %vm1106, %vm1107
        %v1109 = vsel %vm1108, %v1100, %v1105
        %v1110 = vmul.f32 %v1098, %v1109
        %v1111 = vsel %vm671, %v1110, -inf
        %1112 = vmax.xlane.f32.xlu0 %v1111
        %v1113 = vpop.xlane.xlu0 %1112
        %v1114 = vsub.f32 %v1110, %v1113
        %v1115 = vmul.f32 %v1114, 1.442695
        %v1116 = vpow.pop %v1115
        %v1117 = vsel %vm671, %v1116, 0.0
        %1118 = vadd.xlane.f32.xlu0 %v1117
        %v1119 = vpop.xlane.xlu0 %1118
        %v1120 = vrcp.pop %v1119
        %v1121 = vmul.f32 %v1116, %v1120
        %v1122 = vmul.f32 %v1121, %v1109
        %v1123 = vmul.f32 %v1071, %v1122
        %v1124 = vmul.f32 %v1094, %v1122
        %1125 = vrot.lane.b32.xlu0 %v669, 96
        %v1126 = vpop.permute.xlu0 %1125
        %v1129 = vsel %vm671, %v1123, 0
        %1131 = vmatpush.msra.mxu0 0.0
        %1132 = vmatpush.msra.mxu0 0.0
        %1133 = vmatpush.msra.mxu0 0.0
        %1134 = vmatpush.msra.mxu0 0.0
        %1135 = vmatpush.msra.mxu0 0.0
        %1136 = vmatpush.msra.mxu0 0.0
        %1137 = vmatpush.msra.mxu0 0.0
        %1138 = vmatpush.msra.mxu0 0.0
        %1139 = vmatpush.msra.mxu0 0.0
        %1140 = vmatpush.msra.mxu0 0.0
        %1141 = vmatpush.msra.mxu0 0.0
        %1142 = vmatpush.msra.mxu0 0.0
        %1143 = vmatpush.msra.mxu0 0.0
        %1144 = vmatpush.msra.mxu0 0.0
        %1145 = vmatpush.msra.mxu0 0.0
        %1146 = vmatpush.msra.mxu0 %v1126
        %1147 = vmatmul.f32.gmra.mxu0 %v1129
        %v1148 = vpop.f32.mrf.mxu0
        %v1149 = vadd.f32 0.0, %v1148
        %1150 = vdwg.mxu0
        %1151 = vrot.lane.b32.xlu0 %v669, 88
        %v1152 = vpop.permute.xlu0 %1151
        %v1155 = vsel %vm671, %v1124, 0
        %1157 = vmatpush.msra.mxu0 0.0
        %1158 = vmatpush.msra.mxu0 0.0
        %1159 = vmatpush.msra.mxu0 0.0
        %1160 = vmatpush.msra.mxu0 0.0
        %1161 = vmatpush.msra.mxu0 0.0
        %1162 = vmatpush.msra.mxu0 0.0
        %1163 = vmatpush.msra.mxu0 0.0
        %1164 = vmatpush.msra.mxu0 0.0
        %1165 = vmatpush.msra.mxu0 0.0
        %1166 = vmatpush.msra.mxu0 0.0
        %1167 = vmatpush.msra.mxu0 0.0
        %1168 = vmatpush.msra.mxu0 0.0
        %1169 = vmatpush.msra.mxu0 0.0
        %1170 = vmatpush.msra.mxu0 0.0
        %1171 = vmatpush.msra.mxu0 0.0
        %1172 = vmatpush.msra.mxu0 %v1152
        %1173 = vmatmul.f32.gmra.mxu0 %v1155
        %v1174 = vpop.f32.mrf.mxu0
        %v1175 = vadd.f32 0.0, %v1174
        %1176 = vdwg.mxu0
        %v1177 = vsub.f32 %v1149, %v1175
        %1178 = vmatpush.msra.mxu0 0.0
        %1179 = vmatpush.msra.mxu0 0.0
        %1180 = vmatpush.msra.mxu0 0.0
        %1181 = vmatpush.msra.mxu0 0.0
        %1182 = vmatpush.msra.mxu0 0.0
        %1183 = vmatpush.msra.mxu0 0.0
        %1184 = vmatpush.msra.mxu0 0.0
        %1185 = vmatpush.msra.mxu0 0.0
        %1186 = vmatpush.msra.mxu0 0.0
        %1187 = vmatpush.msra.mxu0 0.0
        %1188 = vmatpush.msra.mxu0 0.0
        %1189 = vmatpush.msra.mxu0 0.0
        %1190 = vmatpush.msra.mxu0 0.0
        %1191 = vmatpush.msra.mxu0 0.0
        %1192 = vmatpush.msra.mxu0 0.0
        %1193 = vmatpush.msra.mxu0 %v1126
        %1194 = vmatmul.f32.gmra.mxu0 %v1155
        %v1195 = vpop.f32.mrf.mxu0
        %v1196 = vadd.f32 0.0, %v1195
        %1197 = vdwg.mxu0
        %1198 = vmatpush.msra.mxu0 0.0
        %1199 = vmatpush.msra.mxu0 0.0
        %1200 = vmatpush.msra.mxu0 0.0
        %1201 = vmatpush.msra.mxu0 0.0
        %1202 = vmatpush.msra.mxu0 0.0
        %1203 = vmatpush.msra.mxu0 0.0
        %1204 = vmatpush.msra.mxu0 0.0
        %1205 = vmatpush.msra.mxu0 0.0
        %1206 = vmatpush.msra.mxu0 0.0
        %1207 = vmatpush.msra.mxu0 0.0
        %1208 = vmatpush.msra.mxu0 0.0
        %1209 = vmatpush.msra.mxu0 0.0
        %1210 = vmatpush.msra.mxu0 0.0
        %1211 = vmatpush.msra.mxu0 0.0
        %1212 = vmatpush.msra.mxu0 0.0
        %1213 = vmatpush.msra.mxu0 %v1152
        %1214 = vmatmul.f32.gmra.mxu0 %v1129
        %v1215 = vpop.f32.mrf.mxu0
        %v1216 = vadd.f32 %v1196, %v1215
        %1217 = vdwg.mxu0
        %1218 = vrot.lane.b32.xlu0 %v668, 80
        %v1219 = vpop.permute.xlu0 %1218
        %1221 = vrot.lane.b32.xlu0 %v670, 80
        %v1222 = vpop.permute.xlu0 %1221
        %v1224 = vsel %vm671, %v1219, %v1222
        %1225 = vrot.lane.b32.xlu0 %v668, 72
        %v1226 = vpop.permute.xlu0 %1225
        %v1228 = vsel %vm671, %v1226, %v1043
        %1229 = vrot.lane.b32.xlu0 %v666, 80
        %v1230 = vpop.permute.xlu0 %1229
        %v1231 = vsel %vm681, %v1230, 0
        %v1234 = vsel %vm681, %v1224, 0
        %1236 = vmatpush.xpose.msra.mxu0 0.0
        %1237 = vmatpush.xpose.msra.mxu0 0.0
        %1238 = vmatpush.xpose.msra.mxu0 0.0
        %1239 = vmatpush.xpose.msra.mxu0 0.0
        %1240 = vmatpush.xpose.msra.mxu0 0.0
        %1241 = vmatpush.xpose.msra.mxu0 0.0
        %1242 = vmatpush.xpose.msra.mxu0 0.0
        %1243 = vmatpush.xpose.msra.mxu0 0.0
        %1244 = vmatpush.xpose.msra.mxu0 0.0
        %1245 = vmatpush.xpose.msra.mxu0 0.0
        %1246 = vmatpush.xpose.msra.mxu0 0.0
        %1247 = vmatpush.xpose.msra.mxu0 0.0
        %1248 = vmatpush.xpose.msra.mxu0 0.0
        %1249 = vmatpush.xpose.msra.mxu0 0.0
        %1250 = vmatpush.xpose.msra.mxu0 0.0
        %1251 = vmatpush.xpose.msra.mxu0 %v1234
        %1252 = vmatmul.f32.gmra.mxu0 %v1231
        %v1253 = vpop.f32.mrf.mxu0
        %v1254 = vadd.f32 0.0, %v1253
        %1255 = vdwg.mxu0
        %v1257 = vsel %vm681, %v1228, 0
        %1259 = vmatpush.xpose.msra.mxu0 0.0
        %1260 = vmatpush.xpose.msra.mxu0 0.0
        %1261 = vmatpush.xpose.msra.mxu0 0.0
        %1262 = vmatpush.xpose.msra.mxu0 0.0
        %1263 = vmatpush.xpose.msra.mxu0 0.0
        %1264 = vmatpush.xpose.msra.mxu0 0.0
        %1265 = vmatpush.xpose.msra.mxu0 0.0
        %1266 = vmatpush.xpose.msra.mxu0 0.0
        %1267 = vmatpush.xpose.msra.mxu0 0.0
        %1268 = vmatpush.xpose.msra.mxu0 0.0
        %1269 = vmatpush.xpose.msra.mxu0 0.0
        %1270 = vmatpush.xpose.msra.mxu0 0.0
        %1271 = vmatpush.xpose.msra.mxu0 0.0
        %1272 = vmatpush.xpose.msra.mxu0 0.0
        %1273 = vmatpush.xpose.msra.mxu0 0.0
        %1274 = vmatpush.xpose.msra.mxu0 %v1257
        %1275 = vmatmul.f32.gmra.mxu0 %v1231
        %v1276 = vpop.f32.mrf.mxu0
        %v1277 = vadd.f32 0.0, %v1276
        %1278 = vdwg.mxu0
        %v1279 = vmul.f32 %v1254, %v1254
        %v1280 = vmul.f32 %v1277, %v1277
        %v1281 = vadd.f32 %v1279, %v1280
        %v1282 = vmax.f32 %v1281, 1e-30
        %v1283 = vrsqrt.pop %v1282
        %v1284 = vmul.f32 %v1283, %v1282
        %v1285 = vmul.f32 %v1284, %v1283
        %v1286 = vmul.f32 0.5, %v1285
        %v1287 = vsub.f32 1.5, %v1286
        %v1288 = vmul.f32 %v1283, %v1287
        %vm1289 = vweird.f32 %v1282
        %vm1290 = vweird.f32 %v1283
        %vm1291 = vmor %vm1289, %vm1290
        %v1292 = vsel %vm1291, %v1283, %v1288
        %v1293 = vmul.f32 %v1281, %v1292
        %v1294 = vsel %vm671, %v1293, -inf
        %1295 = vmax.xlane.f32.xlu0 %v1294
        %v1296 = vpop.xlane.xlu0 %1295
        %v1297 = vsub.f32 %v1293, %v1296
        %v1298 = vmul.f32 %v1297, 1.442695
        %v1299 = vpow.pop %v1298
        %v1300 = vsel %vm671, %v1299, 0.0
        %1301 = vadd.xlane.f32.xlu0 %v1300
        %v1302 = vpop.xlane.xlu0 %1301
        %v1303 = vrcp.pop %v1302
        %v1304 = vmul.f32 %v1299, %v1303
        %v1305 = vmul.f32 %v1304, %v1292
        %v1306 = vmul.f32 %v1254, %v1305
        %v1307 = vmul.f32 %v1277, %v1305
        %1308 = vrot.lane.b32.xlu0 %v669, 80
        %v1309 = vpop.permute.xlu0 %1308
        %v1312 = vsel %vm671, %v1306, 0
        %1314 = vmatpush.msra.mxu0 0.0
        %1315 = vmatpush.msra.mxu0 0.0
        %1316 = vmatpush.msra.mxu0 0.0
        %1317 = vmatpush.msra.mxu0 0.0
        %1318 = vmatpush.msra.mxu0 0.0
        %1319 = vmatpush.msra.mxu0 0.0
        %1320 = vmatpush.msra.mxu0 0.0
        %1321 = vmatpush.msra.mxu0 0.0
        %1322 = vmatpush.msra.mxu0 0.0
        %1323 = vmatpush.msra.mxu0 0.0
        %1324 = vmatpush.msra.mxu0 0.0
        %1325 = vmatpush.msra.mxu0 0.0
        %1326 = vmatpush.msra.mxu0 0.0
        %1327 = vmatpush.msra.mxu0 0.0
        %1328 = vmatpush.msra.mxu0 0.0
        %1329 = vmatpush.msra.mxu0 %v1309
        %1330 = vmatmul.f32.gmra.mxu0 %v1312
        %v1331 = vpop.f32.mrf.mxu0
        %v1332 = vadd.f32 0.0, %v1331
        %1333 = vdwg.mxu0
        %1334 = vrot.lane.b32.xlu0 %v669, 72
        %v1335 = vpop.permute.xlu0 %1334
        %v1338 = vsel %vm671, %v1307, 0
        %1340 = vmatpush.msra.mxu0 0.0
        %1341 = vmatpush.msra.mxu0 0.0
        %1342 = vmatpush.msra.mxu0 0.0
        %1343 = vmatpush.msra.mxu0 0.0
        %1344 = vmatpush.msra.mxu0 0.0
        %1345 = vmatpush.msra.mxu0 0.0
        %1346 = vmatpush.msra.mxu0 0.0
        %1347 = vmatpush.msra.mxu0 0.0
        %1348 = vmatpush.msra.mxu0 0.0
        %1349 = vmatpush.msra.mxu0 0.0
        %1350 = vmatpush.msra.mxu0 0.0
        %1351 = vmatpush.msra.mxu0 0.0
        %1352 = vmatpush.msra.mxu0 0.0
        %1353 = vmatpush.msra.mxu0 0.0
        %1354 = vmatpush.msra.mxu0 0.0
        %1355 = vmatpush.msra.mxu0 %v1335
        %1356 = vmatmul.f32.gmra.mxu0 %v1338
        %v1357 = vpop.f32.mrf.mxu0
        %v1358 = vadd.f32 0.0, %v1357
        %1359 = vdwg.mxu0
        %v1360 = vsub.f32 %v1332, %v1358
        %1361 = vmatpush.msra.mxu0 0.0
        %1362 = vmatpush.msra.mxu0 0.0
        %1363 = vmatpush.msra.mxu0 0.0
        %1364 = vmatpush.msra.mxu0 0.0
        %1365 = vmatpush.msra.mxu0 0.0
        %1366 = vmatpush.msra.mxu0 0.0
        %1367 = vmatpush.msra.mxu0 0.0
        %1368 = vmatpush.msra.mxu0 0.0
        %1369 = vmatpush.msra.mxu0 0.0
        %1370 = vmatpush.msra.mxu0 0.0
        %1371 = vmatpush.msra.mxu0 0.0
        %1372 = vmatpush.msra.mxu0 0.0
        %1373 = vmatpush.msra.mxu0 0.0
        %1374 = vmatpush.msra.mxu0 0.0
        %1375 = vmatpush.msra.mxu0 0.0
        %1376 = vmatpush.msra.mxu0 %v1309
        %1377 = vmatmul.f32.gmra.mxu0 %v1338
        %v1378 = vpop.f32.mrf.mxu0
        %v1379 = vadd.f32 0.0, %v1378
        %1380 = vdwg.mxu0
        %1381 = vmatpush.msra.mxu0 0.0
        %1382 = vmatpush.msra.mxu0 0.0
        %1383 = vmatpush.msra.mxu0 0.0
        %1384 = vmatpush.msra.mxu0 0.0
        %1385 = vmatpush.msra.mxu0 0.0
        %1386 = vmatpush.msra.mxu0 0.0
        %1387 = vmatpush.msra.mxu0 0.0
        %1388 = vmatpush.msra.mxu0 0.0
        %1389 = vmatpush.msra.mxu0 0.0
        %1390 = vmatpush.msra.mxu0 0.0
        %1391 = vmatpush.msra.mxu0 0.0
        %1392 = vmatpush.msra.mxu0 0.0
        %1393 = vmatpush.msra.mxu0 0.0
        %1394 = vmatpush.msra.mxu0 0.0
        %1395 = vmatpush.msra.mxu0 0.0
        %1396 = vmatpush.msra.mxu0 %v1335
        %1397 = vmatmul.f32.gmra.mxu0 %v1312
        %v1398 = vpop.f32.mrf.mxu0
        %v1399 = vadd.f32 %v1379, %v1398
        %1400 = vdwg.mxu0
        %1402 = vrot.lane.b32.xlu0 %v849, 8
        %v1403 = vpop.permute.xlu0 %1402
        %1406 = vrot.lane.b32.xlu0 %v994, 16
        %v1407 = vpop.permute.xlu0 %1406
        %1410 = vrot.lane.b32.xlu0 %v1033, 24
        %v1411 = vpop.permute.xlu0 %1410
        %1414 = vrot.lane.b32.xlu0 %v1177, 32
        %v1415 = vpop.permute.xlu0 %1414
        %1418 = vrot.lane.b32.xlu0 %v1216, 40
        %v1419 = vpop.permute.xlu0 %1418
        %1422 = vrot.lane.b32.xlu0 %v1360, 48
        %v1423 = vpop.permute.xlu0 %1422
        %1426 = vrot.lane.b32.xlu0 %v1399, 56
        %v1427 = vpop.permute.xlu0 %1426
        %v1429 = vsel %vm671, %v810, %v1403
        %v1430 = vsel %vm681, %v1429, %v1407
        %vm1431 = vcmask 195584
        %v1432 = vsel %vm1431, %v1430, %v1411
        %vm1433 = vcmask 261120
        %v1434 = vsel %vm1433, %v1432, %v1415
        %vm1435 = vcmask 326656
        %v1436 = vsel %vm1435, %v1434, %v1419
        %vm1437 = vcmask 392192
        %v1438 = vsel %vm1437, %v1436, %v1423
        %vm1439 = vcmask 457728
        %v1440 = vsel %vm1439, %v1438, %v1427
        %v1441 = vld [vmem:[%s6] sm:$0xff]
        %v1442 = vld [vmem:[%s6 + $0x8] sm:$0xff]
        %v1443 = vld [vmem:[%s6 + $0x10] sm:$0xff]
        %v1444 = vld [vmem:[%s6 + $0x18] sm:$0xff]
        %v1445 = vld [vmem:[%s6 + $0x20] sm:$0xff]
        %v1446 = vld [vmem:[%s6 + $0x28] sm:$0xff]
        %v1447 = vld [vmem:[%s6 + $0x30] sm:$0xff]
        %v1448 = vld [vmem:[%s6 + $0x38] sm:$0xff]
        %v1449 = vld [vmem:[%s6 + $0x40] sm:$0xff]
        %v1450 = vld [vmem:[%s6 + $0x48] sm:$0xff]
        %v1451 = vld [vmem:[%s6 + $0x50] sm:$0xff]
        %v1452 = vld [vmem:[%s6 + $0x58] sm:$0xff]
        %v1453 = vld [vmem:[%s6 + $0x60] sm:$0xff]
        %v1454 = vld [vmem:[%s6 + $0x68] sm:$0xff]
        %v1455 = vld [vmem:[%s6 + $0x70] sm:$0xff]
        %v1456 = vld [vmem:[%s6 + $0x78] sm:$0xff]
        %vm1457 = vcmask 523264
        %v1459 = vsel %vm1457, %v1440, 0
        %1461 = vmatpush.msra.mxu0 0.0
        %1462 = vmatpush.msra.mxu0 0.0
        %1463 = vmatpush.msra.mxu0 0.0
        %1464 = vmatpush.msra.mxu0 0.0
        %1465 = vmatpush.msra.mxu0 0.0
        %1466 = vmatpush.msra.mxu0 0.0
        %1467 = vmatpush.msra.mxu0 0.0
        %1468 = vmatpush.msra.mxu0 0.0
        %1469 = vmatpush.msra.mxu0 %v1455
        %1470 = vmatpush.msra.mxu0 %v1453
        %1471 = vmatpush.msra.mxu0 %v1451
        %1472 = vmatpush.msra.mxu0 %v1449
        %1473 = vmatpush.msra.mxu0 %v1447
        %1474 = vmatpush.msra.mxu0 %v1445
        %1475 = vmatpush.msra.mxu0 %v1443
        %1476 = vmatpush.msra.mxu0 %v1441
        %1477 = vmatmul.f32.gmra.mxu0 %v1459
        %v1478 = vpop.f32.mrf.mxu0
        %v1479 = vadd.f32 0.0, %v1478
        %1480 = vdwg.mxu0
        %1481 = vmatpush.msra.mxu0 0.0
        %1482 = vmatpush.msra.mxu0 0.0
        %1483 = vmatpush.msra.mxu0 0.0
        %1484 = vmatpush.msra.mxu0 0.0
        %1485 = vmatpush.msra.mxu0 0.0
        %1486 = vmatpush.msra.mxu0 0.0
        %1487 = vmatpush.msra.mxu0 0.0
        %1488 = vmatpush.msra.mxu0 0.0
        %1489 = vmatpush.msra.mxu0 %v1456
        %1490 = vmatpush.msra.mxu0 %v1454
        %1491 = vmatpush.msra.mxu0 %v1452
        %1492 = vmatpush.msra.mxu0 %v1450
        %1493 = vmatpush.msra.mxu0 %v1448
        %1494 = vmatpush.msra.mxu0 %v1446
        %1495 = vmatpush.msra.mxu0 %v1444
        %1496 = vmatpush.msra.mxu0 %v1442
        %1497 = vmatmul.f32.gmra.mxu0 %v1459
        %v1498 = vpop.f32.mrf.mxu0
        %v1499 = vadd.f32 0.0, %v1498
        %1500 = vdwg.mxu0
        %v1501 = vadd.f32 %v1479, %v594
        %v1502 = vadd.f32 %v1499, %v595
        %v1503 = vlaneseq
        %v1504 = vand.u32 %v1503, 127
        %vm1505 = vcmp.lt.s32.totalorder %v1504, 32
        %v1506 = vsel %vm1505, 1, 0
        %v1507 = vcvt.s32.f32 %v1506
        %v1508 = vmul.f32 %v1501, %v1507
        %1509 = vadd.xlane.f32.xlu0 %v1508
        %v1510 = vpop.xlane.xlu0 %1509
        %v1511 = vmul.f32 %v1510, 0.03125
        %v1512 = vmul.f32 %v1502, %v1507
        %1513 = vadd.xlane.f32.xlu0 %v1512
        %v1514 = vpop.xlane.xlu0 %1513
        %v1515 = vmul.f32 %v1514, 0.03125
        %v1516 = vsub.f32 %v1501, %v1511
        %v1517 = vmul.f32 %v1516, %v1507
        %v1518 = vsub.f32 %v1502, %v1515
        %v1519 = vmul.f32 %v1518, %v1507
        %v1520 = vmul.f32 %v1517, %v1517
        %1521 = vadd.xlane.f32.xlu0 %v1520
        %v1522 = vpop.xlane.xlu0 %1521
        %v1523 = vmul.f32 %v1522, 0.03125
        %v1524 = vadd.f32 %v1523, 1e-06
        %v1525 = vmul.f32 %v1519, %v1519
        %1526 = vadd.xlane.f32.xlu0 %v1525
        %v1527 = vpop.xlane.xlu0 %1526
        %v1528 = vmul.f32 %v1527, 0.03125
        %v1529 = vadd.f32 %v1528, 1e-06
        %v1530 = vmul.f32 %v1517, %v1519
        %1531 = vadd.xlane.f32.xlu0 %v1530
        %v1532 = vpop.xlane.xlu0 %1531
        %v1533 = vmul.f32 %v1532, 0.03125
        %v1534 = vmul.f32 %v1524, %v1529
        %v1535 = vmul.f32 %v1533, %v1533
        %v1536 = vsub.f32 %v1534, %v1535
        %v1537 = vmax.f32 %v1536, 0.0
        %v1538 = vrsqrt.pop %v1537
        %v1539 = vmul.f32 %v1538, %v1537
        %v1540 = vmul.f32 %v1539, %v1538
        %v1541 = vmul.f32 0.5, %v1540
        %v1542 = vsub.f32 1.5, %v1541
        %v1543 = vmul.f32 %v1538, %v1542
        %v1544 = vmul.f32 %v1537, %v1543
        %vm1545 = vcmp.eq.f32.partialorder %v1537, inf
        %v1546 = vsel %vm1545, %v1537, %v1544
        %vm1547 = vcmp.eq.f32.partialorder %v1537, 0.0
        %v1548 = vand.u32 %v1537, 2147483648
        %v1549 = vsel %vm1547, %v1548, %v1546
        %v1550 = vadd.f32 %v1524, %v1529
        %v1551 = vmul.f32 %v1549, 2.0
        %v1552 = vadd.f32 %v1550, %v1551
        %v1553 = vrsqrt.pop %v1552
        %v1554 = vmul.f32 %v1553, %v1552
        %v1555 = vmul.f32 %v1554, %v1553
        %v1556 = vmul.f32 0.5, %v1555
        %v1557 = vsub.f32 1.5, %v1556
        %v1558 = vmul.f32 %v1553, %v1557
        %v1559 = vmul.f32 %v1552, %v1558
        %vm1560 = vcmp.eq.f32.partialorder %v1552, inf
        %v1561 = vsel %vm1560, %v1552, %v1559
        %vm1562 = vcmp.eq.f32.partialorder %v1552, 0.0
        %v1563 = vand.u32 %v1552, 2147483648
        %v1564 = vsel %vm1562, %v1563, %v1561
        %v1565 = vmul.f32 %v1549, %v1564
        %v1566 = vrcp.pop %v1565
        %v1567 = vmul.f32 %v1565, %v1566
        %v1568 = vsub.f32 1.0, %v1567
        %v1569 = vmul.f32 %v1566, %v1568
        %v1570 = vadd.f32 %v1566, %v1569
        %vm1571 = vweird.f32 %v1565
        %vm1572 = vweird.f32 %v1566
        %vm1573 = vmor %vm1571, %vm1572
        %v1574 = vsel %vm1573, %v1566, %v1570
        %v1575 = vand.u32 2147483647, %v1565
        %vm1576 = vcmp.eq.f32.partialorder %v1575, 8.507059e+37
        %v1577 = vand.u32 %v1565, 2147483648
        %v1578 = vor.u32 1.1754944e-38, %v1577
        %v1579 = vsel %vm1576, %v1578, %v1574
        %v1580 = vadd.f32 %v1529, %v1549
        %v1581 = vmul.f32 %v1580, %v1579
        %v1582 = vadd.f32 %v1524, %v1549
        %v1583 = vmul.f32 %v1582, %v1579
        %v1584 = vsub.f32 0.0, %v1533
        %v1585 = vmul.f32 %v1584, %v1579
        %v1586 = vmul.f32 %v1581, %v1517
        %v1587 = vmul.f32 %v1585, %v1519
        %v1588 = vadd.f32 %v1586, %v1587
        %v1589 = vmul.f32 %v1585, %v1517
        %v1590 = vmul.f32 %v1583, %v1519
        %v1591 = vadd.f32 %v1589, %v1590
        %v1592 = vld [vmem:[%s7] sm:$0xf]
        %v1593 = vld [vmem:[%s8] sm:$0x3]
        %v1594 = vperm.slane %v1592, 0
        %v1595 = vmul.f32 %v1594, %v1588
        %v1596 = vperm.slane %v1592, 1
        %v1597 = vmul.f32 %v1596, %v1591
        %v1598 = vadd.f32 %v1595, %v1597
        %v1599 = vperm.slane %v1593, 0
        %v1600 = vadd.f32 %v1598, %v1599
        %1601 = vst [vmem:[%s412] sm:$0xff] %v1600
        %v1602 = vperm.slane %v1592, 2
        %v1603 = vmul.f32 %v1602, %v1588
        %v1604 = vperm.slane %v1592, 3
        %v1605 = vmul.f32 %v1604, %v1591
        %v1606 = vadd.f32 %v1603, %v1605
        %v1607 = vperm.slane %v1593, 1
        %v1608 = vadd.f32 %v1606, %v1607
        %1609 = vst [vmem:[%s419] sm:$0xff] %v1608
        %s1610 = sand.u32 %s256, 1
        %s1611 = scalar_lea.sflag [#allocation5], %s1610
        %s1612 = sand.u32 %s256, 1
        %s1613 = smul.addr %s1612, 8
        %s1614 = scalar_lea.vmem [#allocation4], %s1613
        %s1615 = sand.u32 %s284, 1
        %s1616 = scalar_lea.sflag [#allocation7], %s1615
        %s1617 = sand.u32 %s284, 1
        %s1618 = smul.addr %s1617, 8
        %s1619 = scalar_lea.vmem [#allocation6], %s1618
        // Predicated region
        $region61: #{cv_multihead_attention.1} parent=55 // pred_check
          %p1620 = pneg %p266
        $region62: #{cv_multihead_attention.1} parent=55 // pred_check_branch
          %1622 = sbr.rel (%p1620) target = $region64
        $region63: #{cv_multihead_attention.1} parent=55 // pred_region
          %1624 = vsyncadd %s1611, 0
          %s1625 = sadd.s32 %s33, %s32
          %s1626 = smul.addr %s1625, 8
          %s1627 = scalar_lea.hbm %s9, %s1626
          %s1629 = sshll.u32 %s1614, 4
          %s1630 = int_to_ptr.vmem [resolvable:$true] %s1629
          %s1631 = sshll.u32 %s1627, 4
          %s1632 = int_to_ptr.hbm [resolvable:$true] %s1631
          %1634 = dma.vmem_to_hbm [thread:$0]  %s1630, 128, %s1632, %s1611
        $region64: #{cv_multihead_attention.1} parent=55 // pred_fallthru
          _
        // Predicated region
        $region65: #{cv_multihead_attention.1} parent=55 // pred_check
          %p1635 = pneg %p294
        $region66: #{cv_multihead_attention.1} parent=55 // pred_check_branch
          %1637 = sbr.rel (%p1635) target = $region68
        $region67: #{cv_multihead_attention.1} parent=55 // pred_region
          %1639 = vsyncadd %s1616, 0
          %s1640 = sadd.s32 %s33, %s32
          %s1641 = smul.addr %s1640, 8
          %s1642 = scalar_lea.hbm %s10, %s1641
          %s1644 = sshll.u32 %s1619, 4
          %s1645 = int_to_ptr.vmem [resolvable:$true] %s1644
          %s1646 = sshll.u32 %s1642, 4
          %s1647 = int_to_ptr.hbm [resolvable:$true] %s1646
          %1649 = dma.vmem_to_hbm [thread:$0]  %s1645, 128, %s1647, %s1616
        $region68: #{cv_multihead_attention.1} parent=55 // pred_fallthru
          _
      $region56: #{cv_multihead_attention.1} parent=5 // pred_fallthru
        _
      %p1650 = scmp.le.s32.totalorder 2, %s23
      // Predicated region
      $region69: #{cv_multihead_attention.1} parent=5 // pred_check
        %p1651 = pneg %p1650
      $region70: #{cv_multihead_attention.1} parent=5 // pred_check_branch
        %1653 = sbr.rel (%p1651) target = $region72
      $region71: #{cv_multihead_attention.1} parent=5 // pred_region
        %s1654 = ssub.s32 %s23, 2
        // Predicated region
        $region73: #{cv_multihead_attention.1} parent=71 // pred_check
          %p1655 = pneg %p272
        $region74: #{cv_multihead_attention.1} parent=71 // pred_check_branch
          %1657 = sbr.rel (%p1655) target = $region76
        $region75: #{cv_multihead_attention.1} parent=71 // pred_region
          %s1658 = sand.u32 %s257, 1
          %s1659 = scalar_lea.sflag [#allocation5], %s1658
          %s1660 = sand.u32 %s257, 1
          %s1661 = smul.addr %s1660, 8
          %s1662 = scalar_lea.vmem [#allocation4], %s1661
          %1664 = dma.done %s1659, 128
        $region76: #{cv_multihead_attention.1} parent=71 // pred_fallthru
          _
        // Predicated region
        $region77: #{cv_multihead_attention.1} parent=71 // pred_check
          %p1665 = pneg %p300
        $region78: #{cv_multihead_attention.1} parent=71 // pred_check_branch
          %1667 = sbr.rel (%p1665) target = $region80
        $region79: #{cv_multihead_attention.1} parent=71 // pred_region
          %s1668 = sand.u32 %s285, 1
          %s1669 = scalar_lea.sflag [#allocation7], %s1668
          %s1670 = sand.u32 %s285, 1
          %s1671 = smul.addr %s1670, 8
          %s1672 = scalar_lea.vmem [#allocation6], %s1671
          %1674 = dma.done %s1669, 128
        $region80: #{cv_multihead_attention.1} parent=71 // pred_fallthru
          _
      $region72: #{cv_multihead_attention.1} parent=5 // pred_fallthru
        _
    $region6: #{cv_multihead_attention.1} parent=1 // loop_footer
      %s27 = sadd.s32 1, %s23
    $region7: #{cv_multihead_attention.1} parent=1 // loop_footer_branch
      %22 = sbr.rel target = $region3
    $region8: #{cv_multihead_attention.1} parent=1 // loop_exit
      _
    %1675 = vsyncpa [#allocation5], 1
    %s1676 = scalar_lea.sflag [#allocation5], 1
    %1677 = vsyncpa %s1676, 1
    %1678 = vsyncpa [#allocation7], 1
    %s1679 = scalar_lea.sflag [#allocation7], 1
    %1680 = vsyncpa %s1679, 1

</llo_original>
